<compile_context>
chip_gen: v7x
topology: tpu7x:2x2x1
jax: 0.10.0
libtpu: 0.0.40
codegen_flags: <defaults>
</compile_context>

<pallas_src>
import numpy as np
import jax
import jax.numpy as jnp
from jax.experimental import pallas as pl
from jax.experimental.pallas import tpu as pltpu

# ---- synthetic hparams (efficient_vdvae defaults) -------------------------
NUM_BITS = 8
CHANNELS = 3                         # hparams.data.channels
NUM_MIX = 4                          # hparams.model.num_output_mixtures
BETA = 0.6931472                     # hparams.model.output_gradient_smoothing_beta
MIN_MOL_LOGSCALE = -250.0            # hparams.loss.min_mol_logscale
DIST_BASE = "std"                    # hparams.model.output_distribution_base
TARGET_RES = 16                      # hparams.data.target_res

NUM_CLASSES = 2.0 ** NUM_BITS - 1.0
LANE = 128


def scale_pixels(img):
    img = np.floor(img / np.uint8(2 ** (8 - NUM_BITS))) * 2 ** (8 - NUM_BITS)
    shift = scale = (2 ** 8 - 1) / 2
    return (img - shift) / scale


MIN_PIX = float(scale_pixels(0.0))    # -1.0
MAX_PIX = float(scale_pixels(255.0))  # +1.0


def _softplus_mosaic(x):
    # Numerically stable softplus using only exp/log/abs/max (all of which have
    # guaranteed Mosaic lowerings).  Differs from jax.nn.softplus by < 1.2e-7.
    return jnp.maximum(x, 0.0) + jnp.log(1.0 + jnp.exp(-jnp.abs(x)))


def _softplus_beta(x, beta):
    # nn.Softplus(beta=beta)(x) == softplus(beta * x) / beta   (reference only)
    return jax.nn.softplus(beta * x) / beta


# ------------------------------ Pallas kernel ------------------------------
def _make_dmol_kernel(TS, CH, with_params):
    """Kernel closure for a (TS, 128)-pixel spatial tile, walked in CH-row chunks."""
    M = NUM_MIX
    n_chunks = TS // CH
    f32 = jnp.float32
    inv_nc = np.float32(1.0 / NUM_CLASSES)
    log_half_nc = np.float32(np.log(NUM_CLASSES / 2.0))
    log_delta_thresh = np.float32(np.log(1e-5))
    min_pix = np.float32(MIN_PIX)
    max_pix = np.float32(MAX_PIX)
    beta = np.float32(BETA)

    def kernel(targets_ref, logits_ref, nlp_ref, *param_refs):
        if with_params:
            means_ref, logsc_ref = param_refs

        def mix_slice(c, which, off):
            # which: 0 = means, 1 = scale logits, 2 = coeff logits -> (M, CH, 128)
            start = M + c * 3 * M + which * M
            return logits_ref[0, pl.ds(start, M), pl.ds(off, CH)].astype(f32)

        def process(off):
            # Per-channel target rows for this sublane chunk: (CH, 128)
            t0 = targets_ref[0, 0, pl.ds(off, CH)].astype(f32)
            t1 = targets_ref[0, 1, pl.ds(off, CH)].astype(f32)
            t2 = targets_ref[0, 2, pl.ds(off, CH)].astype(f32)
            ts = (t0, t1, t2)

            def channel_log_probs(c, mean_c):
                scale_logits = mix_slice(c, 1, off)
                if DIST_BASE == "std":
                    # torch clamps against exp(-250), which underflows to 0.0 in
                    # f32, so the clamp is a no-op and is dropped (same math).
                    scales = _softplus_mosaic(beta * scale_logits) / beta
                    inv_stdv = 1.0 / scales
                    log_sc = jnp.log(scales)
                else:  # 'logstd'
                    # TODO(synk): 'logstd' branch not validated against the torch original.
                    log_sc = jnp.maximum(scale_logits, np.float32(MIN_MOL_LOGSCALE))
                    inv_stdv = jnp.exp(-beta * log_sc)

                centered = ts[c] - mean_c                       # (M, CH, 128)
                plus_in = inv_stdv * (centered + inv_nc)
                min_in = inv_stdv * (centered - inv_nc)
                sp_plus = _softplus_mosaic(plus_in)
                sp_min = _softplus_mosaic(min_in)
                log_cdf_plus = plus_in - sp_plus
                log_one_minus_cdf_min = -sp_min
                log_cdf_min = min_in - sp_min
                # Log-domain CDF difference (one exp + one log instead of the
                # reference's two sigmoids + log(clamp(.))); d <= 0 always, so
                # 1 - exp(d) >= 0 (== 0 gives -inf on the untaken branch only).
                d = log_cdf_min - log_cdf_plus
                log_cdf_delta = log_cdf_plus + jnp.log(1.0 - jnp.exp(d))
                mid_in = inv_stdv * centered
                log_pdf_mid = mid_in - log_sc - 2.0 * _softplus_mosaic(mid_in)

                lp = jnp.where(
                    ts[c] == min_pix, log_cdf_plus,
                    jnp.where(ts[c] == max_pix, log_one_minus_cdf_min,
                              jnp.where(log_cdf_delta > log_delta_thresh,
                                        log_cdf_delta,
                                        log_pdf_mid - log_half_nc)))
                return lp, log_sc

            # ---- channel 0 ----
            mm = mix_slice(0, 0, off)
            lp, ls = channel_log_probs(0, mm)
            if with_params:
                means_ref[0, 0, :, pl.ds(off, CH)] = mm
                logsc_ref[0, 0, :, pl.ds(off, CH)] = ls
            acc = lp

            # ---- channel 1 (mean conditioned on channel-0 target) ----
            mm = mix_slice(1, 0, off)
            coeff0 = jnp.tanh(mix_slice(0, 2, off))
            lp, ls = channel_log_probs(1, mm + coeff0 * t0)
            if with_params:
                means_ref[0, 1, :, pl.ds(off, CH)] = mm
                logsc_ref[0, 1, :, pl.ds(off, CH)] = ls
            acc = acc + lp

            # ---- channel 2 ----
            mm = mix_slice(2, 0, off)
            coeff1 = jnp.tanh(mix_slice(1, 2, off))
            coeff2 = jnp.tanh(mix_slice(2, 2, off))
            lp, ls = channel_log_probs(2, mm + coeff1 * t0 + coeff2 * t1)
            if with_params:
                means_ref[0, 2, :, pl.ds(off, CH)] = mm
                logsc_ref[0, 2, :, pl.ds(off, CH)] = ls
            acc = acc + lp

            # Fused log_softmax + logsumexp over the mixture axis:
            #   -lse(acc + log_softmax(lp0)) == lse(lp0) - lse(acc + lp0)
            logit_probs = logits_ref[0, pl.ds(0, M), pl.ds(off, CH)].astype(f32)
            z = acc + logit_probs
            m_a = jnp.max(logit_probs, axis=0)
            lse_a = m_a + jnp.log(jnp.sum(jnp.exp(logit_probs - m_a), axis=0))
            m_z = jnp.max(z, axis=0)
            lse_z = m_z + jnp.log(jnp.sum(jnp.exp(z - m_z), axis=0))
            nlp = lse_a - lse_z                                   # (CH, 128)
            return jnp.sum(nlp, axis=0, keepdims=True)            # (1, 128)

        if n_chunks == 1:
            nlp_ref[0, 0] = process(0)
        else:
            def body(ci, acc_lane):
                off = pl.multiple_of(ci * CH, CH)
                return acc_lane + process(off)
            acc_lane = jax.lax.fori_loop(0, n_chunks, body,
                                         jnp.zeros((1, LANE), f32))
            nlp_ref[0, 0] = acc_lane

    return kernel


# ----------------------- tile / VMEM budget selection -----------------------
def _vmem_capacity_bytes():
    try:
        info = pltpu.get_tpu_info()
        for attr in ("vmem_capacity_bytes", "vmem_size_bytes", "vmem_bytes"):
            v = getattr(info, attr, None)
            if v:
                return int(v)
    except Exception:
        pass
    return 64 * 2 ** 20   # conservative fallback (v7x per-TC physical VMEM)


def _choose_tile(S, blk_bytes_fn, budget):
    """Largest TS dividing S (multiple of 8, or S itself) whose double-buffered
    blocks fit the budget; falls back to the smallest candidate."""
    cands = [d for d in range(8, S + 1, 8) if S % d == 0]
    if S not in cands:
        cands.append(S)
    cands.sort()
    best = cands[0]
    for c in cands:
        if 2 * blk_bytes_fn(c) <= budget:
            best = c
    return best


# --------------------------------- wrapper ---------------------------------
def disc_mix_logistic_loss(targets, logits, global_batch_size, return_params=True):
    B, C, H, W = targets.shape
    assert C == CHANNELS == 3
    M = NUM_MIX
    K = logits.shape[1]
    assert K == M * (1 + 3 * C)
    P = H * W
    assert P % LANE == 0, "H*W must be a multiple of 128 for this lane layout"
    S = P // LANE
    # TODO(synk): for tiny images (S < 8) fold several batch items into the
    # sublane axis to recover VPU/EUP utilization; needs a wrapper transpose.

    t_item = targets.dtype.itemsize
    l_item = logits.dtype.itemsize

    def blk_bytes(ts):
        in_b = C * ts * LANE * t_item + K * ts * LANE * l_item
        out_b = LANE * 4 + (2 * C * M * ts * LANE * 4 if return_params else 0)
        return in_b + out_b

    cap = _vmem_capacity_bytes()
    budget = cap // 2                       # double-buffered blocks <= half VMEM
    TS = _choose_tile(S, blk_bytes, budget)
    n_s = S // TS
    CH = 8 if TS % 8 == 0 else TS           # in-kernel compute chunk (sublanes)

    # Explicit VMEM request: 2 pipeline buffers x (in+out block) + headroom,
    # clamped to [32 MiB, 85% of physical VMEM] (generation-aware for v7x).
    vmem_limit = max(32 << 20, int(2 * blk_bytes(TS) * 1.5) + (8 << 20))
    vmem_limit = min(vmem_limit, int(cap * 0.85))
    vmem_limit = max(vmem_limit, int(2 * blk_bytes(TS)) + (4 << 20))

    t = targets.reshape(B, C, S, LANE)
    lg = logits.reshape(B, K, S, LANE)

    kernel = _make_dmol_kernel(TS, CH, return_params)

    out_shapes = [jax.ShapeDtypeStruct((B, n_s, 1, LANE), jnp.float32)]   # nlp partials
    out_specs = [pl.BlockSpec((1, 1, 1, LANE), lambda b, s: (b, s, 0, 0))]
    if return_params:
        out_shapes += [jax.ShapeDtypeStruct((B, C, M, S, LANE), jnp.float32),   # model_means
                       jax.ShapeDtypeStruct((B, C, M, S, LANE), jnp.float32)]   # log_scales
        out_specs += [pl.BlockSpec((1, C, M, TS, LANE), lambda b, s: (b, 0, 0, s, 0))] * 2

    results = pl.pallas_call(
        kernel,
        out_shape=tuple(out_shapes),
        grid_spec=pltpu.PrefetchScalarGridSpec(
            num_scalar_prefetch=0,
            grid=(B, n_s),
            in_specs=[
                pl.BlockSpec((1, C, TS, LANE), lambda b, s: (b, 0, s, 0)),
                pl.BlockSpec((1, K, TS, LANE), lambda b, s: (b, 0, s, 0)),
            ],
            out_specs=out_specs,
        ),
        compiler_params=pltpu.CompilerParams(
            dimension_semantics=("parallel", "parallel"),
            vmem_limit_bytes=vmem_limit),
    )(t, lg)

    nlp_partial = results[0]
    # Tiny final reductions over batch / tiles stay in JAX glue.
    per_example_loss = jnp.sum(nlp_partial, axis=(1, 2, 3))               # [B]
    avg_per_example_loss = per_example_loss / (H * W * CHANNELS)
    scalar = global_batch_size * TARGET_RES * TARGET_RES * CHANNELS
    loss = jnp.sum(per_example_loss) / scalar
    avg_loss = jnp.sum(avg_per_example_loss) / (global_batch_size * np.log(2))

    if not return_params:
        return loss, avg_loss

    model_means = results[1].reshape(B, C, M, H, W)
    log_scales = results[2].reshape(B, C, M, H, W)
    return loss, avg_loss, model_means, log_scales


# ------------------------- pure-JAX reference (check) -----------------------
def _reference(targets, logits, global_batch_size):
    B, C, H, W = targets.shape
    M = NUM_MIX
    t = targets[:, :, None]                                   # [B,C,1,H,W]
    logit_probs = logits[:, :M]
    l = logits[:, M:].reshape(B, C, 3 * M, H, W)
    model_means = l[:, :, :M]
    scales = jnp.maximum(_softplus_beta(l[:, :, M:2 * M], BETA),
                         jnp.exp(jnp.float32(MIN_MOL_LOGSCALE)))
    inv_stdv = 1.0 / scales
    log_scales = jnp.log(scales)
    coeffs = jnp.tanh(l[:, :, 2 * M:3 * M])
    mean1 = model_means[:, 0:1]
    mean2 = model_means[:, 1:2] + coeffs[:, 0:1] * t[:, 0:1]
    mean3 = model_means[:, 2:3] + coeffs[:, 1:2] * t[:, 0:1] + coeffs[:, 2:3] * t[:, 1:2]
    means = jnp.concatenate([mean1, mean2, mean3], axis=1)
    centered = t - means
    plus_in = inv_stdv * (centered + 1.0 / NUM_CLASSES)
    min_in = inv_stdv * (centered - 1.0 / NUM_CLASSES)
    cdf_plus, cdf_min = jax.nn.sigmoid(plus_in), jax.nn.sigmoid(min_in)
    log_cdf_plus = plus_in - jax.nn.softplus(plus_in)
    log_one_minus_cdf_min = -jax.nn.softplus(min_in)
    cdf_delta = cdf_plus - cdf_min
    mid_in = inv_stdv * centered
    log_pdf_mid = mid_in - log_scales - 2.0 * jax.nn.softplus(mid_in)
    bt = jnp.broadcast_to(t, means.shape)
    lp = jnp.where(bt == MIN_PIX, log_cdf_plus,
                   jnp.where(bt == MAX_PIX, log_one_minus_cdf_min,
                             jnp.where(cdf_delta > 1e-5,
                                       jnp.log(jnp.clip(cdf_delta, 1e-12)),
                                       log_pdf_mid - np.log(NUM_CLASSES / 2.0))))
    lp = jnp.sum(lp, axis=1) + jax.nn.log_softmax(logit_probs, axis=1)
    nlp = -jax.scipy.special.logsumexp(lp, axis=1)
    per_example = jnp.sum(nlp, axis=(1, 2))
    avg_per_example = per_example / (H * W * CHANNELS)
    scalar = global_batch_size * TARGET_RES * TARGET_RES * CHANNELS
    loss = jnp.sum(per_example) / scalar
    avg_loss = jnp.sum(avg_per_example) / (global_batch_size * np.log(2))
    return loss, avg_loss, model_means, log_scales


# ----------------------------------- test -----------------------------------
def _run_case(B, H, W, key):
    C = CHANNELS
    K = NUM_MIX * (1 + 3 * C)
    k1, k2 = jax.random.split(key)
    # Quantized pixel targets scaled to [-1, 1] (so exact min/max edges occur).
    pix = jax.random.randint(k1, (B, C, H, W), 0, 256).astype(jnp.float32)
    targets = (pix - 127.5) / 127.5
    logits = jax.random.normal(k2, (B, K, H, W), dtype=jnp.float32)
    gbs = B

    loss, avg_loss, model_means, log_scales = disc_mix_logistic_loss(
        targets, logits, gbs)
    jax.block_until_ready((loss, avg_loss, model_means, log_scales))

    # loss-only fast path (skips the means/log_scales HBM writeback)
    loss2, avg_loss2 = disc_mix_logistic_loss(targets, logits, gbs,
                                              return_params=False)
    jax.block_until_ready((loss2, avg_loss2))

    rl, ral, rmm, rls = _reference(targets, logits, gbs)
    np.testing.assert_allclose(np.asarray(loss), np.asarray(rl), rtol=1e-4, atol=1e-4)
    np.testing.assert_allclose(np.asarray(avg_loss), np.asarray(ral), rtol=1e-4, atol=1e-4)
    np.testing.assert_allclose(np.asarray(loss2), np.asarray(rl), rtol=1e-4, atol=1e-4)
    np.testing.assert_allclose(np.asarray(avg_loss2), np.asarray(ral), rtol=1e-4, atol=1e-4)
    np.testing.assert_allclose(np.asarray(model_means), np.asarray(rmm), rtol=1e-4, atol=1e-4)
    np.testing.assert_allclose(np.asarray(log_scales), np.asarray(rls), rtol=1e-4, atol=1e-4)


if __name__ == "__main__":
    key = jax.random.PRNGKey(0)
    k1, k2 = jax.random.split(key)
    _run_case(2, TARGET_RES, TARGET_RES, k1)   # 16x16: S=2, single-chunk path
    _run_case(2, 64, 64, k2)                   # 64x64: S=32, chunked fori_loop path
    print("KERNEL_OK")
</pallas_src>

<mosaic_0001>
module attributes {stable_mosaic.version = 11 : i64} {
  func.func @kernel(%arg0: i32, %arg1: i32, %arg2: memref<1x3x2x128xf32, #tpu.memory_space<vmem>>, %arg3: memref<1x40x2x128xf32, #tpu.memory_space<vmem>>, %arg4: memref<1x1x1x128xf32, #tpu.memory_space<vmem>>, %arg5: memref<1x3x4x2x128xf32, #tpu.memory_space<vmem>>, %arg6: memref<1x3x4x2x128xf32, #tpu.memory_space<vmem>>) attributes {dimension_semantics = [#tpu.dimension_semantics<parallel>, #tpu.dimension_semantics<parallel>], iteration_bounds = array<i64: 2, 1>, scalar_prefetch = 0 : i64, scratch_operands = 0 : i64, tpu.core_type = #tpu.core_type<tc>, window_params = [{transform_indices = @transform_0, window_bounds = array<i64: 1, 3, 2, 128>}, {transform_indices = @transform_1, window_bounds = array<i64: 1, 40, 2, 128>}, {transform_indices = @transform_2, window_bounds = array<i64: 1, 1, 1, 128>}, {transform_indices = @transform_3, window_bounds = array<i64: 1, 3, 4, 2, 128>}, {transform_indices = @transform_4, window_bounds = array<i64: 1, 3, 4, 2, 128>}]} {
    %c0 = arith.constant 0 : index
    %c0_0 = arith.constant 0 : index
    %c0_1 = arith.constant 0 : index
    %c0_2 = arith.constant 0 : index
    %0 = vector.load %arg2[%c0, %c0_0, %c0_1, %c0_2] : memref<1x3x2x128xf32, #tpu.memory_space<vmem>>, vector<1x1x2x128xf32>
    %1 = vector.shape_cast %0 : vector<1x1x2x128xf32> to vector<2x128xf32>
    %c0_3 = arith.constant 0 : index
    %c1 = arith.constant 1 : index
    %c0_4 = arith.constant 0 : index
    %c0_5 = arith.constant 0 : index
    %2 = vector.load %arg2[%c0_3, %c1, %c0_4, %c0_5] : memref<1x3x2x128xf32, #tpu.memory_space<vmem>>, vector<1x1x2x128xf32>
    %3 = vector.shape_cast %2 : vector<1x1x2x128xf32> to vector<2x128xf32>
    %c0_6 = arith.constant 0 : index
    %c2 = arith.constant 2 : index
    %c0_7 = arith.constant 0 : index
    %c0_8 = arith.constant 0 : index
    %4 = vector.load %arg2[%c0_6, %c2, %c0_7, %c0_8] : memref<1x3x2x128xf32, #tpu.memory_space<vmem>>, vector<1x1x2x128xf32>
    %5 = vector.shape_cast %4 : vector<1x1x2x128xf32> to vector<2x128xf32>
    %c0_9 = arith.constant 0 : index
    %c4 = arith.constant 4 : index
    %c0_10 = arith.constant 0 : index
    %c0_11 = arith.constant 0 : index
    %6 = vector.load %arg3[%c0_9, %c4, %c0_10, %c0_11] : memref<1x40x2x128xf32, #tpu.memory_space<vmem>>, vector<1x4x2x128xf32>
    %7 = vector.shape_cast %6 : vector<1x4x2x128xf32> to vector<4x2x128xf32>
    %c0_12 = arith.constant 0 : index
    %c8 = arith.constant 8 : index
    %c0_13 = arith.constant 0 : index
    %c0_14 = arith.constant 0 : index
    %8 = vector.load %arg3[%c0_12, %c8, %c0_13, %c0_14] : memref<1x40x2x128xf32, #tpu.memory_space<vmem>>, vector<1x4x2x128xf32>
    %9 = vector.shape_cast %8 : vector<1x4x2x128xf32> to vector<4x2x128xf32>
    %cst = arith.constant 0.693147182 : f32
    %10 = vector.broadcast %cst : f32 to vector<4x2x128xf32>
    %11 = arith.mulf %10, %9 : vector<4x2x128xf32>
    %cst_15 = arith.constant 0.000000e+00 : f32
    %12 = vector.broadcast %cst_15 : f32 to vector<4x2x128xf32>
    %13 = arith.maximumf %11, %12 : vector<4x2x128xf32>
    %14 = math.absf %11 : vector<4x2x128xf32>
    %cst_16 = arith.constant 0.000000e+00 : f32
    %15 = vector.broadcast %cst_16 : f32 to vector<4x2x128xf32>
    %16 = arith.subf %15, %14 : vector<4x2x128xf32>
    %17 = math.exp %16 : vector<4x2x128xf32>
    %cst_17 = arith.constant 1.000000e+00 : f32
    %18 = vector.broadcast %cst_17 : f32 to vector<4x2x128xf32>
    %19 = arith.addf %18, %17 : vector<4x2x128xf32>
    %20 = math.log %19 : vector<4x2x128xf32>
    %21 = arith.addf %13, %20 : vector<4x2x128xf32>
    %cst_18 = arith.constant 0.693147182 : f32
    %22 = vector.broadcast %cst_18 : f32 to vector<4x2x128xf32>
    %23 = arith.divf %21, %22 : vector<4x2x128xf32>
    %cst_19 = arith.constant 1.000000e+00 : f32
    %24 = vector.broadcast %cst_19 : f32 to vector<4x2x128xf32>
    %25 = arith.divf %24, %23 : vector<4x2x128xf32>
    %26 = math.log %23 : vector<4x2x128xf32>
    %27 = vector.shape_cast %1 : vector<2x128xf32> to vector<1x2x128xf32>
    %28 = vector.broadcast %27 : vector<1x2x128xf32> to vector<4x2x128xf32>
    %29 = arith.subf %28, %7 : vector<4x2x128xf32>
    %cst_20 = arith.constant 0.00392156886 : f32
    %30 = vector.broadcast %cst_20 : f32 to vector<4x2x128xf32>
    %31 = arith.addf %29, %30 : vector<4x2x128xf32>
    %32 = arith.mulf %25, %31 : vector<4x2x128xf32>
    %cst_21 = arith.constant 0.00392156886 : f32
    %33 = vector.broadcast %cst_21 : f32 to vector<4x2x128xf32>
    %34 = arith.subf %29, %33 : vector<4x2x128xf32>
    %35 = arith.mulf %25, %34 : vector<4x2x128xf32>
    %cst_22 = arith.constant 0.000000e+00 : f32
    %36 = vector.broadcast %cst_22 : f32 to vector<4x2x128xf32>
    %37 = arith.maximumf %32, %36 : vector<4x2x128xf32>
    %38 = math.absf %32 : vector<4x2x128xf32>
    %cst_23 = arith.constant 0.000000e+00 : f32
    %39 = vector.broadcast %cst_23 : f32 to vector<4x2x128xf32>
    %40 = arith.subf %39, %38 : vector<4x2x128xf32>
    %41 = math.exp %40 : vector<4x2x128xf32>
    %cst_24 = arith.constant 1.000000e+00 : f32
    %42 = vector.broadcast %cst_24 : f32 to vector<4x2x128xf32>
    %43 = arith.addf %42, %41 : vector<4x2x128xf32>
    %44 = math.log %43 : vector<4x2x128xf32>
    %45 = arith.addf %37, %44 : vector<4x2x128xf32>
    %cst_25 = arith.constant 0.000000e+00 : f32
    %46 = vector.broadcast %cst_25 : f32 to vector<4x2x128xf32>
    %47 = arith.maximumf %35, %46 : vector<4x2x128xf32>
    %48 = math.absf %35 : vector<4x2x128xf32>
    %cst_26 = arith.constant 0.000000e+00 : f32
    %49 = vector.broadcast %cst_26 : f32 to vector<4x2x128xf32>
    %50 = arith.subf %49, %48 : vector<4x2x128xf32>
    %51 = math.exp %50 : vector<4x2x128xf32>
    %cst_27 = arith.constant 1.000000e+00 : f32
    %52 = vector.broadcast %cst_27 : f32 to vector<4x2x128xf32>
    %53 = arith.addf %52, %51 : vector<4x2x128xf32>
    %54 = math.log %53 : vector<4x2x128xf32>
    %55 = arith.addf %47, %54 : vector<4x2x128xf32>
    %56 = arith.subf %32, %45 : vector<4x2x128xf32>
    %cst_28 = arith.constant 0.000000e+00 : f32
    %57 = vector.broadcast %cst_28 : f32 to vector<4x2x128xf32>
    %58 = arith.subf %57, %55 : vector<4x2x128xf32>
    %59 = arith.subf %35, %55 : vector<4x2x128xf32>
    %60 = arith.subf %59, %56 : vector<4x2x128xf32>
    %61 = math.exp %60 : vector<4x2x128xf32>
    %cst_29 = arith.constant 1.000000e+00 : f32
    %62 = vector.broadcast %cst_29 : f32 to vector<4x2x128xf32>
    %63 = arith.subf %62, %61 : vector<4x2x128xf32>
    %64 = math.log %63 : vector<4x2x128xf32>
    %65 = arith.addf %56, %64 : vector<4x2x128xf32>
    %66 = arith.mulf %25, %29 : vector<4x2x128xf32>
    %67 = arith.subf %66, %26 : vector<4x2x128xf32>
    %cst_30 = arith.constant 0.000000e+00 : f32
    %68 = vector.broadcast %cst_30 : f32 to vector<4x2x128xf32>
    %69 = arith.maximumf %66, %68 : vector<4x2x128xf32>
    %70 = math.absf %66 : vector<4x2x128xf32>
    %cst_31 = arith.constant 0.000000e+00 : f32
    %71 = vector.broadcast %cst_31 : f32 to vector<4x2x128xf32>
    %72 = arith.subf %71, %70 : vector<4x2x128xf32>
    %73 = math.exp %72 : vector<4x2x128xf32>
    %cst_32 = arith.constant 1.000000e+00 : f32
    %74 = vector.broadcast %cst_32 : f32 to vector<4x2x128xf32>
    %75 = arith.addf %74, %73 : vector<4x2x128xf32>
    %76 = math.log %75 : vector<4x2x128xf32>
    %77 = arith.addf %69, %76 : vector<4x2x128xf32>
    %cst_33 = arith.constant 2.000000e+00 : f32
    %78 = vector.broadcast %cst_33 : f32 to vector<4x2x128xf32>
    %79 = arith.mulf %78, %77 : vector<4x2x128xf32>
    %80 = arith.subf %67, %79 : vector<4x2x128xf32>
    %cst_34 = arith.constant -1.000000e+00 : f32
    %81 = vector.broadcast %cst_34 : f32 to vector<2x128xf32>
    %82 = arith.cmpf oeq, %1, %81 : vector<2x128xf32>
    %cst_35 = arith.constant 1.000000e+00 : f32
    %83 = vector.broadcast %cst_35 : f32 to vector<2x128xf32>
    %84 = arith.cmpf oeq, %1, %83 : vector<2x128xf32>
    %cst_36 = arith.constant -11.5129251 : f32
    %85 = vector.broadcast %cst_36 : f32 to vector<4x2x128xf32>
    %86 = arith.cmpf ogt, %65, %85 : vector<4x2x128xf32>
    %cst_37 = arith.constant 4.8481164 : f32
    %87 = vector.broadcast %cst_37 : f32 to vector<4x2x128xf32>
    %88 = arith.subf %80, %87 : vector<4x2x128xf32>
    %89 = arith.select %86, %65, %88 : vector<4x2x128xi1>, vector<4x2x128xf32>
    %90 = vector.shape_cast %84 : vector<2x128xi1> to vector<1x2x128xi1>
    %91 = vector.broadcast %90 : vector<1x2x128xi1> to vector<4x2x128xi1>
    %92 = arith.select %91, %58, %89 : vector<4x2x128xi1>, vector<4x2x128xf32>
    %93 = vector.shape_cast %82 : vector<2x128xi1> to vector<1x2x128xi1>
    %94 = vector.broadcast %93 : vector<1x2x128xi1> to vector<4x2x128xi1>
    %95 = arith.select %94, %56, %92 : vector<4x2x128xi1>, vector<4x2x128xf32>
    %c0_38 = arith.constant 0 : index
    %c0_39 = arith.constant 0 : index
    %c0_40 = arith.constant 0 : index
    %c0_41 = arith.constant 0 : index
    %c0_42 = arith.constant 0 : index
    %96 = vector.load %arg5[%c0_38, %c0_39, %c0_40, %c0_41, %c0_42] : memref<1x3x4x2x128xf32, #tpu.memory_space<vmem>>, vector<1x1x4x2x128xf32>
    %97 = vector.shape_cast %96 : vector<1x1x4x2x128xf32> to vector<4x2x128xf32>
    %98 = vector.shape_cast %7 : vector<4x2x128xf32> to vector<1x1x4x2x128xf32>
    tpu.vector_store %arg5[%c0_38, %c0_39, %c0_40, %c0_41, %c0_42], %98 {strides = array<i32>} : memref<1x3x4x2x128xf32, #tpu.memory_space<vmem>>, vector<1x1x4x2x128xf32>,
    %c0_43 = arith.constant 0 : index
    %c0_44 = arith.constant 0 : index
    %c0_45 = arith.constant 0 : index
    %c0_46 = arith.constant 0 : index
    %c0_47 = arith.constant 0 : index
    %99 = vector.load %arg6[%c0_43, %c0_44, %c0_45, %c0_46, %c0_47] : memref<1x3x4x2x128xf32, #tpu.memory_space<vmem>>, vector<1x1x4x2x128xf32>
    %100 = vector.shape_cast %99 : vector<1x1x4x2x128xf32> to vector<4x2x128xf32>
    %101 = vector.shape_cast %26 : vector<4x2x128xf32> to vector<1x1x4x2x128xf32>
    tpu.vector_store %arg6[%c0_43, %c0_44, %c0_45, %c0_46, %c0_47], %101 {strides = array<i32>} : memref<1x3x4x2x128xf32, #tpu.memory_space<vmem>>, vector<1x1x4x2x128xf32>,
    %c0_48 = arith.constant 0 : index
    %c16 = arith.constant 16 : index
    %c0_49 = arith.constant 0 : index
    %c0_50 = arith.constant 0 : index
    %102 = vector.load %arg3[%c0_48, %c16, %c0_49, %c0_50] : memref<1x40x2x128xf32, #tpu.memory_space<vmem>>, vector<1x4x2x128xf32>
    %103 = vector.shape_cast %102 : vector<1x4x2x128xf32> to vector<4x2x128xf32>
    %c0_51 = arith.constant 0 : index
    %c12 = arith.constant 12 : index
    %c0_52 = arith.constant 0 : index
    %c0_53 = arith.constant 0 : index
    %104 = vector.load %arg3[%c0_51, %c12, %c0_52, %c0_53] : memref<1x40x2x128xf32, #tpu.memory_space<vmem>>, vector<1x4x2x128xf32>
    %105 = vector.shape_cast %104 : vector<1x4x2x128xf32> to vector<4x2x128xf32>
    %106 = math.tanh %105 : vector<4x2x128xf32>
    %107 = vector.shape_cast %1 : vector<2x128xf32> to vector<1x2x128xf32>
    %108 = vector.broadcast %107 : vector<1x2x128xf32> to vector<4x2x128xf32>
    %109 = arith.mulf %106, %108 : vector<4x2x128xf32>
    %110 = arith.addf %103, %109 : vector<4x2x128xf32>
    %c0_54 = arith.constant 0 : index
    %c20 = arith.constant 20 : index
    %c0_55 = arith.constant 0 : index
    %c0_56 = arith.constant 0 : index
    %111 = vector.load %arg3[%c0_54, %c20, %c0_55, %c0_56] : memref<1x40x2x128xf32, #tpu.memory_space<vmem>>, vector<1x4x2x128xf32>
    %112 = vector.shape_cast %111 : vector<1x4x2x128xf32> to vector<4x2x128xf32>
    %cst_57 = arith.constant 0.693147182 : f32
    %113 = vector.broadcast %cst_57 : f32 to vector<4x2x128xf32>
    %114 = arith.mulf %113, %112 : vector<4x2x128xf32>
    %cst_58 = arith.constant 0.000000e+00 : f32
    %115 = vector.broadcast %cst_58 : f32 to vector<4x2x128xf32>
    %116 = arith.maximumf %114, %115 : vector<4x2x128xf32>
    %117 = math.absf %114 : vector<4x2x128xf32>
    %cst_59 = arith.constant 0.000000e+00 : f32
    %118 = vector.broadcast %cst_59 : f32 to vector<4x2x128xf32>
    %119 = arith.subf %118, %117 : vector<4x2x128xf32>
    %120 = math.exp %119 : vector<4x2x128xf32>
    %cst_60 = arith.constant 1.000000e+00 : f32
    %121 = vector.broadcast %cst_60 : f32 to vector<4x2x128xf32>
    %122 = arith.addf %121, %120 : vector<4x2x128xf32>
    %123 = math.log %122 : vector<4x2x128xf32>
    %124 = arith.addf %116, %123 : vector<4x2x128xf32>
    %cst_61 = arith.constant 0.693147182 : f32
    %125 = vector.broadcast %cst_61 : f32 to vector<4x2x128xf32>
    %126 = arith.divf %124, %125 : vector<4x2x128xf32>
    %cst_62 = arith.constant 1.000000e+00 : f32
    %127 = vector.broadcast %cst_62 : f32 to vector<4x2x128xf32>
    %128 = arith.divf %127, %126 : vector<4x2x128xf32>
    %129 = math.log %126 : vector<4x2x128xf32>
    %130 = vector.shape_cast %3 : vector<2x128xf32> to vector<1x2x128xf32>
    %131 = vector.broadcast %130 : vector<1x2x128xf32> to vector<4x2x128xf32>
    %132 = arith.subf %131, %110 : vector<4x2x128xf32>
    %cst_63 = arith.constant 0.00392156886 : f32
    %133 = vector.broadcast %cst_63 : f32 to vector<4x2x128xf32>
    %134 = arith.addf %132, %133 : vector<4x2x128xf32>
    %135 = arith.mulf %128, %134 : vector<4x2x128xf32>
    %cst_64 = arith.constant 0.00392156886 : f32
    %136 = vector.broadcast %cst_64 : f32 to vector<4x2x128xf32>
    %137 = arith.subf %132, %136 : vector<4x2x128xf32>
    %138 = arith.mulf %128, %137 : vector<4x2x128xf32>
    %cst_65 = arith.constant 0.000000e+00 : f32
    %139 = vector.broadcast %cst_65 : f32 to vector<4x2x128xf32>
    %140 = arith.maximumf %135, %139 : vector<4x2x128xf32>
    %141 = math.absf %135 : vector<4x2x128xf32>
    %cst_66 = arith.constant 0.000000e+00 : f32
    %142 = vector.broadcast %cst_66 : f32 to vector<4x2x128xf32>
    %143 = arith.subf %142, %141 : vector<4x2x128xf32>
    %144 = math.exp %143 : vector<4x2x128xf32>
    %cst_67 = arith.constant 1.000000e+00 : f32
    %145 = vector.broadcast %cst_67 : f32 to vector<4x2x128xf32>
    %146 = arith.addf %145, %144 : vector<4x2x128xf32>
    %147 = math.log %146 : vector<4x2x128xf32>
    %148 = arith.addf %140, %147 : vector<4x2x128xf32>
    %cst_68 = arith.constant 0.000000e+00 : f32
    %149 = vector.broadcast %cst_68 : f32 to vector<4x2x128xf32>
    %150 = arith.maximumf %138, %149 : vector<4x2x128xf32>
    %151 = math.absf %138 : vector<4x2x128xf32>
    %cst_69 = arith.constant 0.000000e+00 : f32
    %152 = vector.broadcast %cst_69 : f32 to vector<4x2x128xf32>
    %153 = arith.subf %152, %151 : vector<4x2x128xf32>
    %154 = math.exp %153 : vector<4x2x128xf32>
    %cst_70 = arith.constant 1.000000e+00 : f32
    %155 = vector.broadcast %cst_70 : f32 to vector<4x2x128xf32>
    %156 = arith.addf %155, %154 : vector<4x2x128xf32>
    %157 = math.log %156 : vector<4x2x128xf32>
    %158 = arith.addf %150, %157 : vector<4x2x128xf32>
    %159 = arith.subf %135, %148 : vector<4x2x128xf32>
    %cst_71 = arith.constant 0.000000e+00 : f32
    %160 = vector.broadcast %cst_71 : f32 to vector<4x2x128xf32>
    %161 = arith.subf %160, %158 : vector<4x2x128xf32>
    %162 = arith.subf %138, %158 : vector<4x2x128xf32>
    %163 = arith.subf %162, %159 : vector<4x2x128xf32>
    %164 = math.exp %163 : vector<4x2x128xf32>
    %cst_72 = arith.constant 1.000000e+00 : f32
    %165 = vector.broadcast %cst_72 : f32 to vector<4x2x128xf32>
    %166 = arith.subf %165, %164 : vector<4x2x128xf32>
    %167 = math.log %166 : vector<4x2x128xf32>
    %168 = arith.addf %159, %167 : vector<4x2x128xf32>
    %169 = arith.mulf %128, %132 : vector<4x2x128xf32>
    %170 = arith.subf %169, %129 : vector<4x2x128xf32>
    %cst_73 = arith.constant 0.000000e+00 : f32
    %171 = vector.broadcast %cst_73 : f32 to vector<4x2x128xf32>
    %172 = arith.maximumf %169, %171 : vector<4x2x128xf32>
    %173 = math.absf %169 : vector<4x2x128xf32>
    %cst_74 = arith.constant 0.000000e+00 : f32
    %174 = vector.broadcast %cst_74 : f32 to vector<4x2x128xf32>
    %175 = arith.subf %174, %173 : vector<4x2x128xf32>
    %176 = math.exp %175 : vector<4x2x128xf32>
    %cst_75 = arith.constant 1.000000e+00 : f32
    %177 = vector.broadcast %cst_75 : f32 to vector<4x2x128xf32>
    %178 = arith.addf %177, %176 : vector<4x2x128xf32>
    %179 = math.log %178 : vector<4x2x128xf32>
    %180 = arith.addf %172, %179 : vector<4x2x128xf32>
    %cst_76 = arith.constant 2.000000e+00 : f32
    %181 = vector.broadcast %cst_76 : f32 to vector<4x2x128xf32>
    %182 = arith.mulf %181, %180 : vector<4x2x128xf32>
    %183 = arith.subf %170, %182 : vector<4x2x128xf32>
    %cst_77 = arith.constant -1.000000e+00 : f32
    %184 = vector.broadcast %cst_77 : f32 to vector<2x128xf32>
    %185 = arith.cmpf oeq, %3, %184 : vector<2x128xf32>
    %cst_78 = arith.constant 1.000000e+00 : f32
    %186 = vector.broadcast %cst_78 : f32 to vector<2x128xf32>
    %187 = arith.cmpf oeq, %3, %186 : vector<2x128xf32>
    %cst_79 = arith.constant -11.5129251 : f32
    %188 = vector.broadcast %cst_79 : f32 to vector<4x2x128xf32>
    %189 = arith.cmpf ogt, %168, %188 : vector<4x2x128xf32>
    %cst_80 = arith.constant 4.8481164 : f32
    %190 = vector.broadcast %cst_80 : f32 to vector<4x2x128xf32>
    %191 = arith.subf %183, %190 : vector<4x2x128xf32>
    %192 = arith.select %189, %168, %191 : vector<4x2x128xi1>, vector<4x2x128xf32>
    %193 = vector.shape_cast %187 : vector<2x128xi1> to vector<1x2x128xi1>
    %194 = vector.broadcast %193 : vector<1x2x128xi1> to vector<4x2x128xi1>
    %195 = arith.select %194, %161, %192 : vector<4x2x128xi1>, vector<4x2x128xf32>
    %196 = vector.shape_cast %185 : vector<2x128xi1> to vector<1x2x128xi1>
    %197 = vector.broadcast %196 : vector<1x2x128xi1> to vector<4x2x128xi1>
    %198 = arith.select %197, %159, %195 : vector<4x2x128xi1>, vector<4x2x128xf32>
    %c0_81 = arith.constant 0 : index
    %c1_82 = arith.constant 1 : index
    %c0_83 = arith.constant 0 : index
    %c0_84 = arith.constant 0 : index
    %c0_85 = arith.constant 0 : index
    %199 = vector.load %arg5[%c0_81, %c1_82, %c0_83, %c0_84, %c0_85] : memref<1x3x4x2x128xf32, #tpu.memory_space<vmem>>, vector<1x1x4x2x128xf32>
    %200 = vector.shape_cast %199 : vector<1x1x4x2x128xf32> to vector<4x2x128xf32>
    %201 = vector.shape_cast %103 : vector<4x2x128xf32> to vector<1x1x4x2x128xf32>
    tpu.vector_store %arg5[%c0_81, %c1_82, %c0_83, %c0_84, %c0_85], %201 {strides = array<i32>} : memref<1x3x4x2x128xf32, #tpu.memory_space<vmem>>, vector<1x1x4x2x128xf32>,
    %c0_86 = arith.constant 0 : index
    %c1_87 = arith.constant 1 : index
    %c0_88 = arith.constant 0 : index
    %c0_89 = arith.constant 0 : index
    %c0_90 = arith.constant 0 : index
    %202 = vector.load %arg6[%c0_86, %c1_87, %c0_88, %c0_89, %c0_90] : memref<1x3x4x2x128xf32, #tpu.memory_space<vmem>>, vector<1x1x4x2x128xf32>
    %203 = vector.shape_cast %202 : vector<1x1x4x2x128xf32> to vector<4x2x128xf32>
    %204 = vector.shape_cast %129 : vector<4x2x128xf32> to vector<1x1x4x2x128xf32>
    tpu.vector_store %arg6[%c0_86, %c1_87, %c0_88, %c0_89, %c0_90], %204 {strides = array<i32>} : memref<1x3x4x2x128xf32, #tpu.memory_space<vmem>>, vector<1x1x4x2x128xf32>,
    %205 = arith.addf %95, %198 : vector<4x2x128xf32>
    %c0_91 = arith.constant 0 : index
    %c28 = arith.constant 28 : index
    %c0_92 = arith.constant 0 : index
    %c0_93 = arith.constant 0 : index
    %206 = vector.load %arg3[%c0_91, %c28, %c0_92, %c0_93] : memref<1x40x2x128xf32, #tpu.memory_space<vmem>>, vector<1x4x2x128xf32>
    %207 = vector.shape_cast %206 : vector<1x4x2x128xf32> to vector<4x2x128xf32>
    %c0_94 = arith.constant 0 : index
    %c24 = arith.constant 24 : index
    %c0_95 = arith.constant 0 : index
    %c0_96 = arith.constant 0 : index
    %208 = vector.load %arg3[%c0_94, %c24, %c0_95, %c0_96] : memref<1x40x2x128xf32, #tpu.memory_space<vmem>>, vector<1x4x2x128xf32>
    %209 = vector.shape_cast %208 : vector<1x4x2x128xf32> to vector<4x2x128xf32>
    %210 = math.tanh %209 : vector<4x2x128xf32>
    %c0_97 = arith.constant 0 : index
    %c36 = arith.constant 36 : index
    %c0_98 = arith.constant 0 : index
    %c0_99 = arith.constant 0 : index
    %211 = vector.load %arg3[%c0_97, %c36, %c0_98, %c0_99] : memref<1x40x2x128xf32, #tpu.memory_space<vmem>>, vector<1x4x2x128xf32>
    %212 = vector.shape_cast %211 : vector<1x4x2x128xf32> to vector<4x2x128xf32>
    %213 = math.tanh %212 : vector<4x2x128xf32>
    %214 = vector.shape_cast %1 : vector<2x128xf32> to vector<1x2x128xf32>
    %215 = vector.broadcast %214 : vector<1x2x128xf32> to vector<4x2x128xf32>
    %216 = arith.mulf %210, %215 : vector<4x2x128xf32>
    %217 = arith.addf %207, %216 : vector<4x2x128xf32>
    %218 = vector.shape_cast %3 : vector<2x128xf32> to vector<1x2x128xf32>
    %219 = vector.broadcast %218 : vector<1x2x128xf32> to vector<4x2x128xf32>
    %220 = arith.mulf %213, %219 : vector<4x2x128xf32>
    %221 = arith.addf %217, %220 : vector<4x2x128xf32>
    %c0_100 = arith.constant 0 : index
    %c32 = arith.constant 32 : index
    %c0_101 = arith.constant 0 : index
    %c0_102 = arith.constant 0 : index
    %222 = vector.load %arg3[%c0_100, %c32, %c0_101, %c0_102] : memref<1x40x2x128xf32, #tpu.memory_space<vmem>>, vector<1x4x2x128xf32>
    %223 = vector.shape_cast %222 : vector<1x4x2x128xf32> to vector<4x2x128xf32>
    %cst_103 = arith.constant 0.693147182 : f32
    %224 = vector.broadcast %cst_103 : f32 to vector<4x2x128xf32>
    %225 = arith.mulf %224, %223 : vector<4x2x128xf32>
    %cst_104 = arith.constant 0.000000e+00 : f32
    %226 = vector.broadcast %cst_104 : f32 to vector<4x2x128xf32>
    %227 = arith.maximumf %225, %226 : vector<4x2x128xf32>
    %228 = math.absf %225 : vector<4x2x128xf32>
    %cst_105 = arith.constant 0.000000e+00 : f32
    %229 = vector.broadcast %cst_105 : f32 to vector<4x2x128xf32>
    %230 = arith.subf %229, %228 : vector<4x2x128xf32>
    %231 = math.exp %230 : vector<4x2x128xf32>
    %cst_106 = arith.constant 1.000000e+00 : f32
    %232 = vector.broadcast %cst_106 : f32 to vector<4x2x128xf32>
    %233 = arith.addf %232, %231 : vector<4x2x128xf32>
    %234 = math.log %233 : vector<4x2x128xf32>
    %235 = arith.addf %227, %234 : vector<4x2x128xf32>
    %cst_107 = arith.constant 0.693147182 : f32
    %236 = vector.broadcast %cst_107 : f32 to vector<4x2x128xf32>
    %237 = arith.divf %235, %236 : vector<4x2x128xf32>
    %cst_108 = arith.constant 1.000000e+00 : f32
    %238 = vector.broadcast %cst_108 : f32 to vector<4x2x128xf32>
    %239 = arith.divf %238, %237 : vector<4x2x128xf32>
    %240 = math.log %237 : vector<4x2x128xf32>
    %241 = vector.shape_cast %5 : vector<2x128xf32> to vector<1x2x128xf32>
    %242 = vector.broadcast %241 : vector<1x2x128xf32> to vector<4x2x128xf32>
    %243 = arith.subf %242, %221 : vector<4x2x128xf32>
    %cst_109 = arith.constant 0.00392156886 : f32
    %244 = vector.broadcast %cst_109 : f32 to vector<4x2x128xf32>
    %245 = arith.addf %243, %244 : vector<4x2x128xf32>
    %246 = arith.mulf %239, %245 : vector<4x2x128xf32>
    %cst_110 = arith.constant 0.00392156886 : f32
    %247 = vector.broadcast %cst_110 : f32 to vector<4x2x128xf32>
    %248 = arith.subf %243, %247 : vector<4x2x128xf32>
    %249 = arith.mulf %239, %248 : vector<4x2x128xf32>
    %cst_111 = arith.constant 0.000000e+00 : f32
    %250 = vector.broadcast %cst_111 : f32 to vector<4x2x128xf32>
    %251 = arith.maximumf %246, %250 : vector<4x2x128xf32>
    %252 = math.absf %246 : vector<4x2x128xf32>
    %cst_112 = arith.constant 0.000000e+00 : f32
    %253 = vector.broadcast %cst_112 : f32 to vector<4x2x128xf32>
    %254 = arith.subf %253, %252 : vector<4x2x128xf32>
    %255 = math.exp %254 : vector<4x2x128xf32>
    %cst_113 = arith.constant 1.000000e+00 : f32
    %256 = vector.broadcast %cst_113 : f32 to vector<4x2x128xf32>
    %257 = arith.addf %256, %255 : vector<4x2x128xf32>
    %258 = math.log %257 : vector<4x2x128xf32>
    %259 = arith.addf %251, %258 : vector<4x2x128xf32>
    %cst_114 = arith.constant 0.000000e+00 : f32
    %260 = vector.broadcast %cst_114 : f32 to vector<4x2x128xf32>
    %261 = arith.maximumf %249, %260 : vector<4x2x128xf32>
    %262 = math.absf %249 : vector<4x2x128xf32>
    %cst_115 = arith.constant 0.000000e+00 : f32
    %263 = vector.broadcast %cst_115 : f32 to vector<4x2x128xf32>
    %264 = arith.subf %263, %262 : vector<4x2x128xf32>
    %265 = math.exp %264 : vector<4x2x128xf32>
    %cst_116 = arith.constant 1.000000e+00 : f32
    %266 = vector.broadcast %cst_116 : f32 to vector<4x2x128xf32>
    %267 = arith.addf %266, %265 : vector<4x2x128xf32>
    %268 = math.log %267 : vector<4x2x128xf32>
    %269 = arith.addf %261, %268 : vector<4x2x128xf32>
    %270 = arith.subf %246, %259 : vector<4x2x128xf32>
    %cst_117 = arith.constant 0.000000e+00 : f32
    %271 = vector.broadcast %cst_117 : f32 to vector<4x2x128xf32>
    %272 = arith.subf %271, %269 : vector<4x2x128xf32>
    %273 = arith.subf %249, %269 : vector<4x2x128xf32>
    %274 = arith.subf %273, %270 : vector<4x2x128xf32>
    %275 = math.exp %274 : vector<4x2x128xf32>
    %cst_118 = arith.constant 1.000000e+00 : f32
    %276 = vector.broadcast %cst_118 : f32 to vector<4x2x128xf32>
    %277 = arith.subf %276, %275 : vector<4x2x128xf32>
    %278 = math.log %277 : vector<4x2x128xf32>
    %279 = arith.addf %270, %278 : vector<4x2x128xf32>
    %280 = arith.mulf %239, %243 : vector<4x2x128xf32>
    %281 = arith.subf %280, %240 : vector<4x2x128xf32>
    %cst_119 = arith.constant 0.000000e+00 : f32
    %282 = vector.broadcast %cst_119 : f32 to vector<4x2x128xf32>
    %283 = arith.maximumf %280, %282 : vector<4x2x128xf32>
    %284 = math.absf %280 : vector<4x2x128xf32>
    %cst_120 = arith.constant 0.000000e+00 : f32
    %285 = vector.broadcast %cst_120 : f32 to vector<4x2x128xf32>
    %286 = arith.subf %285, %284 : vector<4x2x128xf32>
    %287 = math.exp %286 : vector<4x2x128xf32>
    %cst_121 = arith.constant 1.000000e+00 : f32
    %288 = vector.broadcast %cst_121 : f32 to vector<4x2x128xf32>
    %289 = arith.addf %288, %287 : vector<4x2x128xf32>
    %290 = math.log %289 : vector<4x2x128xf32>
    %291 = arith.addf %283, %290 : vector<4x2x128xf32>
    %cst_122 = arith.constant 2.000000e+00 : f32
    %292 = vector.broadcast %cst_122 : f32 to vector<4x2x128xf32>
    %293 = arith.mulf %292, %291 : vector<4x2x128xf32>
    %294 = arith.subf %281, %293 : vector<4x2x128xf32>
    %cst_123 = arith.constant -1.000000e+00 : f32
    %295 = vector.broadcast %cst_123 : f32 to vector<2x128xf32>
    %296 = arith.cmpf oeq, %5, %295 : vector<2x128xf32>
    %cst_124 = arith.constant 1.000000e+00 : f32
    %297 = vector.broadcast %cst_124 : f32 to vector<2x128xf32>
    %298 = arith.cmpf oeq, %5, %297 : vector<2x128xf32>
    %cst_125 = arith.constant -11.5129251 : f32
    %299 = vector.broadcast %cst_125 : f32 to vector<4x2x128xf32>
    %300 = arith.cmpf ogt, %279, %299 : vector<4x2x128xf32>
    %cst_126 = arith.constant 4.8481164 : f32
    %301 = vector.broadcast %cst_126 : f32 to vector<4x2x128xf32>
    %302 = arith.subf %294, %301 : vector<4x2x128xf32>
    %303 = arith.select %300, %279, %302 : vector<4x2x128xi1>, vector<4x2x128xf32>
    %304 = vector.shape_cast %298 : vector<2x128xi1> to vector<1x2x128xi1>
    %305 = vector.broadcast %304 : vector<1x2x128xi1> to vector<4x2x128xi1>
    %306 = arith.select %305, %272, %303 : vector<4x2x128xi1>, vector<4x2x128xf32>
    %307 = vector.shape_cast %296 : vector<2x128xi1> to vector<1x2x128xi1>
    %308 = vector.broadcast %307 : vector<1x2x128xi1> to vector<4x2x128xi1>
    %309 = arith.select %308, %270, %306 : vector<4x2x128xi1>, vector<4x2x128xf32>
    %c0_127 = arith.constant 0 : index
    %c2_128 = arith.constant 2 : index
    %c0_129 = arith.constant 0 : index
    %c0_130 = arith.constant 0 : index
    %c0_131 = arith.constant 0 : index
    %310 = vector.load %arg5[%c0_127, %c2_128, %c0_129, %c0_130, %c0_131] : memref<1x3x4x2x128xf32, #tpu.memory_space<vmem>>, vector<1x1x4x2x128xf32>
    %311 = vector.shape_cast %310 : vector<1x1x4x2x128xf32> to vector<4x2x128xf32>
    %312 = vector.shape_cast %207 : vector<4x2x128xf32> to vector<1x1x4x2x128xf32>
    tpu.vector_store %arg5[%c0_127, %c2_128, %c0_129, %c0_130, %c0_131], %312 {strides = array<i32>} : memref<1x3x4x2x128xf32, #tpu.memory_space<vmem>>, vector<1x1x4x2x128xf32>,
    %c0_132 = arith.constant 0 : index
    %c2_133 = arith.constant 2 : index
    %c0_134 = arith.constant 0 : index
    %c0_135 = arith.constant 0 : index
    %c0_136 = arith.constant 0 : index
    %313 = vector.load %arg6[%c0_132, %c2_133, %c0_134, %c0_135, %c0_136] : memref<1x3x4x2x128xf32, #tpu.memory_space<vmem>>, vector<1x1x4x2x128xf32>
    %314 = vector.shape_cast %313 : vector<1x1x4x2x128xf32> to vector<4x2x128xf32>
    %315 = vector.shape_cast %240 : vector<4x2x128xf32> to vector<1x1x4x2x128xf32>
    tpu.vector_store %arg6[%c0_132, %c2_133, %c0_134, %c0_135, %c0_136], %315 {strides = array<i32>} : memref<1x3x4x2x128xf32, #tpu.memory_space<vmem>>, vector<1x1x4x2x128xf32>,
    %316 = arith.addf %205, %309 : vector<4x2x128xf32>
    %c0_137 = arith.constant 0 : index
    %c0_138 = arith.constant 0 : index
    %c0_139 = arith.constant 0 : index
    %c0_140 = arith.constant 0 : index
    %317 = vector.load %arg3[%c0_137, %c0_138, %c0_139, %c0_140] : memref<1x40x2x128xf32, #tpu.memory_space<vmem>>, vector<1x4x2x128xf32>
    %318 = vector.shape_cast %317 : vector<1x4x2x128xf32> to vector<4x2x128xf32>
    %319 = arith.addf %316, %318 : vector<4x2x128xf32>
    %cst_141 = arith.constant dense<0xFF800000> : vector<2x128xf32>
    %320 = vector.multi_reduction <maximumf>, %318, %cst_141 [0] : vector<4x2x128xf32> to vector<2x128xf32>
    %321 = vector.shape_cast %320 : vector<2x128xf32> to vector<1x2x128xf32>
    %322 = vector.broadcast %321 : vector<1x2x128xf32> to vector<4x2x128xf32>
    %323 = arith.subf %318, %322 : vector<4x2x128xf32>
    %324 = math.exp %323 : vector<4x2x128xf32>
    %cst_142 = arith.constant dense<0.000000e+00> : vector<2x128xf32>
    %325 = vector.multi_reduction <add>, %324, %cst_142 [0] : vector<4x2x128xf32> to vector<2x128xf32>
    %326 = math.log %325 : vector<2x128xf32>
    %327 = arith.addf %320, %326 : vector<2x128xf32>
    %cst_143 = arith.constant dense<0xFF800000> : vector<2x128xf32>
    %328 = vector.multi_reduction <maximumf>, %319, %cst_143 [0] : vector<4x2x128xf32> to vector<2x128xf32>
    %329 = vector.shape_cast %328 : vector<2x128xf32> to vector<1x2x128xf32>
    %330 = vector.broadcast %329 : vector<1x2x128xf32> to vector<4x2x128xf32>
    %331 = arith.subf %319, %330 : vector<4x2x128xf32>
    %332 = math.exp %331 : vector<4x2x128xf32>
    %cst_144 = arith.constant dense<0.000000e+00> : vector<2x128xf32>
    %333 = vector.multi_reduction <add>, %332, %cst_144 [0] : vector<4x2x128xf32> to vector<2x128xf32>
    %334 = math.log %333 : vector<2x128xf32>
    %335 = arith.addf %328, %334 : vector<2x128xf32>
    %336 = arith.subf %327, %335 : vector<2x128xf32>
    %cst_145 = arith.constant dense<0.000000e+00> : vector<128xf32>
    %337 = vector.multi_reduction <add>, %336, %cst_145 [0] : vector<2x128xf32> to vector<128xf32>
    %338 = vector.shape_cast %337 : vector<128xf32> to vector<1x128xf32>
    %c0_146 = arith.constant 0 : index
    %c0_147 = arith.constant 0 : index
    %c0_148 = arith.constant 0 : index
    %c0_149 = arith.constant 0 : index
    %339 = vector.load %arg4[%c0_146, %c0_147, %c0_148, %c0_149] : memref<1x1x1x128xf32, #tpu.memory_space<vmem>>, vector<1x1x1x128xf32>
    %340 = vector.shape_cast %339 : vector<1x1x1x128xf32> to vector<1x128xf32>
    %341 = vector.shape_cast %338 : vector<1x128xf32> to vector<1x1x1x128xf32>
    tpu.vector_store %arg4[%c0_146, %c0_147, %c0_148, %c0_149], %341 {strides = array<i32>} : memref<1x1x1x128xf32, #tpu.memory_space<vmem>>, vector<1x1x1x128xf32>,
    return
  }
  func.func @transform_0(%arg0: i32, %arg1: i32) -> (i32, i32, i32, i32) {
    %c0_i32 = arith.constant 0 : i32
    %c0_i32_0 = arith.constant 0 : i32
    %c0_i32_1 = arith.constant 0 : i32
    return %arg0, %c0_i32, %arg1, %c0_i32_0 : i32, i32, i32, i32
  }
  func.func @transform_1(%arg0: i32, %arg1: i32) -> (i32, i32, i32, i32) {
    %c0_i32 = arith.constant 0 : i32
    %c0_i32_0 = arith.constant 0 : i32
    %c0_i32_1 = arith.constant 0 : i32
    return %arg0, %c0_i32, %arg1, %c0_i32_0 : i32, i32, i32, i32
  }
  func.func @transform_2(%arg0: i32, %arg1: i32) -> (i32, i32, i32, i32) {
    %c0_i32 = arith.constant 0 : i32
    %c0_i32_0 = arith.constant 0 : i32
    %c0_i32_1 = arith.constant 0 : i32
    return %arg0, %arg1, %c0_i32, %c0_i32_0 : i32, i32, i32, i32
  }
  func.func @transform_3(%arg0: i32, %arg1: i32) -> (i32, i32, i32, i32, i32) {
    %c0_i32 = arith.constant 0 : i32
    %c0_i32_0 = arith.constant 0 : i32
    %c0_i32_1 = arith.constant 0 : i32
    %c0_i32_2 = arith.constant 0 : i32
    return %arg0, %c0_i32, %c0_i32_0, %arg1, %c0_i32_1 : i32, i32, i32, i32, i32
  }
  func.func @transform_4(%arg0: i32, %arg1: i32) -> (i32, i32, i32, i32, i32) {
    %c0_i32 = arith.constant 0 : i32
    %c0_i32_0 = arith.constant 0 : i32
    %c0_i32_1 = arith.constant 0 : i32
    %c0_i32_2 = arith.constant 0 : i32
    return %arg0, %c0_i32, %c0_i32_0, %arg1, %c0_i32_1 : i32, i32, i32, i32, i32
  }
}

</mosaic_0001>

<llo_original>
// kernel: tpu_custom_call.1
$region0: #{tpu_custom_call.1}
  #allocation0 [shape = 'u32[]', space=smem, size = 0x4, offset = 0x4, fixed_abs, tag = 'smem constant byte address 0x4 - core index']
  #allocation1 [shape = 'u32[144,128]{1,0:T(1,128)}', space=vmem, size = 0x12000, scoped, tag = 'internal scratch']
  %s0 = inlined_call_operand.hbm [shape: f32[2,3,2,128], index: 0, kind: input, shape index: {}]
  %s1 = inlined_call_operand.hbm [shape: f32[2,40,2,128], index: 1, kind: input, shape index: {}]
  %s2 = inlined_call_operand.hbm [shape: f32[2,1,1,128], index: 2, kind: output, shape index: {0}]
  %s3 = inlined_call_operand.hbm [shape: f32[2,3,4,2,128], index: 3, kind: output, shape index: {1}]
  %s4 = inlined_call_operand.hbm [shape: f32[2,3,4,2,128], index: 4, kind: output, shape index: {2}]
  %5 = xla_tuple %s2, %s3, %s4
  %s6 = sld [smem:[#allocation0]]
  $region65: #{tpu_custom_call.1} parent=0
    _
  %s8 = ssub.s32 1, %s6
  %s9 = scalar_select 0, %s8, %s6
  $region1: #{tpu_custom_call.1} parent=0
    #allocation2 [shape = 'u8[6144]{0}', space=vmem, size = 0x1800, scoped, tag = 'input window, operand 0']
    #allocation3 [shape = 's32[2]{0}', space=sflag, size = 0x8, scoped, tag = 'scoped memory for tpu_custom_call.1']
    #allocation4 [shape = 's32[2]{0}', space=sflag, size = 0x8, scoped, tag = 'scoped memory for tpu_custom_call.1']
    #allocation5 [shape = 'u8[81920]{0}', space=vmem, size = 0x14000, scoped, tag = 'input window, operand 1']
    #allocation6 [shape = 's32[2]{0}', space=sflag, size = 0x8, scoped, tag = 'scoped memory for tpu_custom_call.1']
    #allocation7 [shape = 'u8[1024]{0}', space=vmem, size = 0x400, scoped, tag = 'output window, operand 0']
    #allocation8 [shape = 'u8[24576]{0}', space=vmem, size = 0x6000, scoped, tag = 'output window, operand 1']
    #allocation9 [shape = 's32[2]{0}', space=sflag, size = 0x8, scoped, tag = 'scoped memory for tpu_custom_call.1']
    #allocation10 [shape = 'u8[24576]{0}', space=vmem, size = 0x6000, scoped, tag = 'output window, operand 2']
    %10 = vsyncpa [#allocation3], 0
    %s11 = scalar_lea.sflag [#allocation3], 1
    %12 = vsyncpa %s11, 0
    %13 = vsyncpa [#allocation6], 0
    %s14 = scalar_lea.sflag [#allocation6], 1
    %15 = vsyncpa %s14, 0
    %16 = vsyncpa [#allocation4], 0
    %s17 = scalar_lea.sflag [#allocation4], 1
    %18 = vsyncpa %s17, 0
    %19 = vsyncpa [#allocation9], 0
    %s20 = scalar_lea.sflag [#allocation9], 1
    %21 = vsyncpa %s20, 0
    loop: start=0, step=1, limit=4
    $region2: #{tpu_custom_call.1} parent=1 // loop_pre_header
      _
    $region3: #{tpu_custom_call.1} parent=1 // loop_header
      %s23 = sphi 0, %s27
      %p24 = scmp.ge.s32.totalorder %s23, 4
      %s30 = sphi 0, %s42
      %s31 = sphi 0, %s38
      %s32 = sphi 0, %s30
      %s33 = sphi 0, %s31
      %s34 = sphi 0, %s32
      %s35 = sphi 0, %s33
      %s47 = sphi 0, %s49
      %s50 = sphi 0, %s47
      %s51 = sphi 0, %s50
      %s67 = sphi 0, %s51
      %s75 = sphi 0, %s77
      %s78 = sphi 0, %s75
      %s79 = sphi 0, %s78
      %s95 = sphi 0, %s79
      %s103 = sphi 0, %s105
      %s106 = sphi 0, %s103
      %s107 = sphi 0, %s106
      %s123 = sphi 0, %s107
      %s131 = sphi 0, %s133
      %s134 = sphi 0, %s131
      %s135 = sphi 0, %s134
      %s151 = sphi 0, %s135
      %s159 = sphi 0, %s161
      %s162 = sphi 0, %s159
      %s163 = sphi 0, %s162
      %s179 = sphi 0, %s163
    $region4: #{tpu_custom_call.1} parent=1 // loop_header_branch
      %26 = sbr.rel (%p24) target = $region8
    $region5: #{tpu_custom_call.1} parent=1 // loop_body
      %s28 = ssub.s32 %s23, 1
      %s29 = ssub.s32 %s23, 2
      %s36 = sadd.s32 1, %s31
      %p37 = scmp.ge.s32.totalorder %s36, 1
      %s38 = scalar_select %p37, 0, %s36
      %s39 = sadd.s32 1, %s30
      %s40 = scalar_select %p37, %s39, %s30
      %p41 = scmp.ge.s32.totalorder %s40, 2
      %s42 = scalar_select %p41, 0, %s40
      %s43 = ssub.s32 %s30, %s42
      %s44 = ssub.s32 %s31, %s38
      %s45 = sor.u32 %s43, %s44
      %p46 = scmp.eq.s32.totalorder %s45, 0
      %s48 = sadd.s32 %s47, 1
      %s49 = scalar_select %p46, %s47, %s48
      %p52 = pneg %p46
      %p53 = scmp.eq.s32.totalorder %s23, 1
      %p54 = por %p52, %p53
      %p55 = scmp.ne.s32.totalorder %s47, %s50
      %p56 = scmp.eq.s32.totalorder %s23, 0
      %p57 = por %p55, %p56
      %p58 = scmp.ne.s32.totalorder %s47, %s50
      %p59 = scmp.eq.s32.totalorder %s28, 1
      %p60 = por %p58, %p59
      %p61 = scmp.ne.s32.totalorder %s50, %s51
      %p62 = scmp.eq.s32.totalorder %s28, 0
      %p63 = por %p61, %p62
      %p64 = scmp.ne.s32.totalorder %s50, %s51
      %p65 = scmp.eq.s32.totalorder %s29, 1
      %p66 = por %p64, %p65
      %p68 = scmp.ne.s32.totalorder %s51, %s67
      %p69 = scmp.eq.s32.totalorder %s29, 0
      %p70 = por %p68, %p69
      %s71 = ssub.s32 %s30, %s42
      %s72 = ssub.s32 %s31, %s38
      %s73 = sor.u32 %s71, %s72
      %p74 = scmp.eq.s32.totalorder %s73, 0
      %s76 = sadd.s32 %s75, 1
      %s77 = scalar_select %p74, %s75, %s76
      %p80 = pneg %p74
      %p81 = scmp.eq.s32.totalorder %s23, 1
      %p82 = por %p80, %p81
      %p83 = scmp.ne.s32.totalorder %s75, %s78
      %p84 = scmp.eq.s32.totalorder %s23, 0
      %p85 = por %p83, %p84
      %p86 = scmp.ne.s32.totalorder %s75, %s78
      %p87 = scmp.eq.s32.totalorder %s28, 1
      %p88 = por %p86, %p87
      %p89 = scmp.ne.s32.totalorder %s78, %s79
      %p90 = scmp.eq.s32.totalorder %s28, 0
      %p91 = por %p89, %p90
      %p92 = scmp.ne.s32.totalorder %s78, %s79
      %p93 = scmp.eq.s32.totalorder %s29, 1
      %p94 = por %p92, %p93
      %p96 = scmp.ne.s32.totalorder %s79, %s95
      %p97 = scmp.eq.s32.totalorder %s29, 0
      %p98 = por %p96, %p97
      %s99 = ssub.s32 %s30, %s42
      %s100 = ssub.s32 %s31, %s38
      %s101 = sor.u32 %s99, %s100
      %p102 = scmp.eq.s32.totalorder %s101, 0
      %s104 = sadd.s32 %s103, 1
      %s105 = scalar_select %p102, %s103, %s104
      %p108 = pneg %p102
      %p109 = scmp.eq.s32.totalorder %s23, 1
      %p110 = por %p108, %p109
      %p111 = scmp.ne.s32.totalorder %s103, %s106
      %p112 = scmp.eq.s32.totalorder %s23, 0
      %p113 = por %p111, %p112
      %p114 = scmp.ne.s32.totalorder %s103, %s106
      %p115 = scmp.eq.s32.totalorder %s28, 1
      %p116 = por %p114, %p115
      %p117 = scmp.ne.s32.totalorder %s106, %s107
      %p118 = scmp.eq.s32.totalorder %s28, 0
      %p119 = por %p117, %p118
      %p120 = scmp.ne.s32.totalorder %s106, %s107
      %p121 = scmp.eq.s32.totalorder %s29, 1
      %p122 = por %p120, %p121
      %p124 = scmp.ne.s32.totalorder %s107, %s123
      %p125 = scmp.eq.s32.totalorder %s29, 0
      %p126 = por %p124, %p125
      %s127 = ssub.s32 %s30, %s42
      %s128 = ssub.s32 %s31, %s38
      %s129 = sor.u32 %s127, %s128
      %p130 = scmp.eq.s32.totalorder %s129, 0
      %s132 = sadd.s32 %s131, 1
      %s133 = scalar_select %p130, %s131, %s132
      %p136 = pneg %p130
      %p137 = scmp.eq.s32.totalorder %s23, 1
      %p138 = por %p136, %p137
      %p139 = scmp.ne.s32.totalorder %s131, %s134
      %p140 = scmp.eq.s32.totalorder %s23, 0
      %p141 = por %p139, %p140
      %p142 = scmp.ne.s32.totalorder %s131, %s134
      %p143 = scmp.eq.s32.totalorder %s28, 1
      %p144 = por %p142, %p143
      %p145 = scmp.ne.s32.totalorder %s134, %s135
      %p146 = scmp.eq.s32.totalorder %s28, 0
      %p147 = por %p145, %p146
      %p148 = scmp.ne.s32.totalorder %s134, %s135
      %p149 = scmp.eq.s32.totalorder %s29, 1
      %p150 = por %p148, %p149
      %p152 = scmp.ne.s32.totalorder %s135, %s151
      %p153 = scmp.eq.s32.totalorder %s29, 0
      %p154 = por %p152, %p153
      %s155 = ssub.s32 %s30, %s42
      %s156 = ssub.s32 %s31, %s38
      %s157 = sor.u32 %s155, %s156
      %p158 = scmp.eq.s32.totalorder %s157, 0
      %s160 = sadd.s32 %s159, 1
      %s161 = scalar_select %p158, %s159, %s160
      %p164 = pneg %p158
      %p165 = scmp.eq.s32.totalorder %s23, 1
      %p166 = por %p164, %p165
      %p167 = scmp.ne.s32.totalorder %s159, %s162
      %p168 = scmp.eq.s32.totalorder %s23, 0
      %p169 = por %p167, %p168
      %p170 = scmp.ne.s32.totalorder %s159, %s162
      %p171 = scmp.eq.s32.totalorder %s28, 1
      %p172 = por %p170, %p171
      %p173 = scmp.ne.s32.totalorder %s162, %s163
      %p174 = scmp.eq.s32.totalorder %s28, 0
      %p175 = por %p173, %p174
      %p176 = scmp.ne.s32.totalorder %s162, %s163
      %p177 = scmp.eq.s32.totalorder %s29, 1
      %p178 = por %p176, %p177
      %p180 = scmp.ne.s32.totalorder %s163, %s179
      %p181 = scmp.eq.s32.totalorder %s29, 0
      %p182 = por %p180, %p181
      %p183 = scmp.le.s32.totalorder 1, %s23
      %p184 = scmp.lt.s32.totalorder %s23, 3
      %p185 = pnand %p183, %p184
      %p186 = pneg %p185
      // Predicated region
      $region9: #{tpu_custom_call.1} parent=5 // pred_check
        _
      $region10: #{tpu_custom_call.1} parent=5 // pred_check_branch
        %188 = sbr.rel (%p185) target = $region12
      $region11: #{tpu_custom_call.1} parent=5 // pred_region
        %s189 = ssub.s32 %s23, 1
      $region12: #{tpu_custom_call.1} parent=5 // pred_fallthru
        _
      %p190 = scmp.lt.s32.totalorder %s23, 2
      // Predicated region
      $region13: #{tpu_custom_call.1} parent=5 // pred_check
        %p191 = pneg %p190
      $region14: #{tpu_custom_call.1} parent=5 // pred_check_branch
        %193 = sbr.rel (%p191) target = $region16
      $region15: #{tpu_custom_call.1} parent=5 // pred_region
        // Predicated region
        $region17: #{tpu_custom_call.1} parent=15 // pred_check
          %p194 = pneg %p57
        $region18: #{tpu_custom_call.1} parent=15 // pred_check_branch
          %196 = sbr.rel (%p194) target = $region20
        $region19: #{tpu_custom_call.1} parent=15 // pred_region
          %s197 = sand.u32 %s47, 1
          %s198 = scalar_lea.sflag [#allocation3], %s197
          %s199 = sand.u32 %s47, 1
          %s200 = smul.addr %s199, 6
          %s201 = scalar_lea.vmem [#allocation2], %s200
          %s203 = ssub.s32 96, 96
          %204 = vsyncadd %s198, %s203
          %s205 = smul.addr %s30, 3
          %s206 = sadd.s32 %s31, %s205
          %s207 = smul.addr %s206, 32
          %s208 = scalar_lea.hbm %s0, %s207
          %s209 = sshll.u32 %s201, 4
          %s210 = int_to_ptr.vmem [resolvable:$true] %s209
          %215 = dma.hbm_to_vmem [thread:$0]  %s208, 96, %s210, %s198, 32, 32, 2
        $region20: #{tpu_custom_call.1} parent=15 // pred_fallthru
          _
        // Predicated region
        $region21: #{tpu_custom_call.1} parent=15 // pred_check
          %p216 = pneg %p85
        $region22: #{tpu_custom_call.1} parent=15 // pred_check_branch
          %218 = sbr.rel (%p216) target = $region24
        $region23: #{tpu_custom_call.1} parent=15 // pred_region
          %s219 = sand.u32 %s75, 1
          %s220 = scalar_lea.sflag [#allocation6], %s219
          %s221 = sand.u32 %s75, 1
          %s222 = smul.addr %s221, 80
          %s223 = scalar_lea.vmem [#allocation5], %s222
          %s225 = ssub.s32 1280, 1280
          %226 = vsyncadd %s220, %s225
          %s227 = smul.addr %s30, 40
          %s228 = sadd.s32 %s31, %s227
          %s229 = smul.addr %s228, 32
          %s230 = scalar_lea.hbm %s1, %s229
          %s231 = sshll.u32 %s223, 4
          %s232 = int_to_ptr.vmem [resolvable:$true] %s231
          %237 = dma.hbm_to_vmem [thread:$0]  %s230, 1280, %s232, %s220, 32, 32, 2
        $region24: #{tpu_custom_call.1} parent=15 // pred_fallthru
          _
      $region16: #{tpu_custom_call.1} parent=5 // pred_fallthru
        _
      %p238 = scmp.le.s32.totalorder 1, %s23
      %p239 = scmp.lt.s32.totalorder %s23, 3
      %p240 = pnand %p238, %p239
      %p241 = pneg %p240
      // Predicated region
      $region25: #{tpu_custom_call.1} parent=5 // pred_check
        _
      $region26: #{tpu_custom_call.1} parent=5 // pred_check_branch
        %243 = sbr.rel (%p240) target = $region28
      $region27: #{tpu_custom_call.1} parent=5 // pred_region
        %s244 = ssub.s32 %s23, 1
        %s245 = sand.u32 %s50, 1
        %s246 = scalar_lea.sflag [#allocation3], %s245
        %s247 = sand.u32 %s50, 1
        %s248 = smul.addr %s247, 6
        %s249 = scalar_lea.vmem [#allocation2], %s248
        // Predicated region
        $region29: #{tpu_custom_call.1} parent=27 // pred_check
          %p250 = pneg %p63
        $region30: #{tpu_custom_call.1} parent=27 // pred_check_branch
          %252 = sbr.rel (%p250) target = $region32
        $region31: #{tpu_custom_call.1} parent=27 // pred_region
          %253 = dma.done %s246, 96
        $region32: #{tpu_custom_call.1} parent=27 // pred_fallthru
          _
        %s254 = sand.u32 %s78, 1
        %s255 = scalar_lea.sflag [#allocation6], %s254
        %s256 = sand.u32 %s78, 1
        %s257 = smul.addr %s256, 80
        %s258 = scalar_lea.vmem [#allocation5], %s257
        // Predicated region
        $region33: #{tpu_custom_call.1} parent=27 // pred_check
          %p259 = pneg %p91
        $region34: #{tpu_custom_call.1} parent=27 // pred_check_branch
          %261 = sbr.rel (%p259) target = $region36
        $region35: #{tpu_custom_call.1} parent=27 // pred_region
          %262 = dma.done %s255, 1280
        $region36: #{tpu_custom_call.1} parent=27 // pred_fallthru
          _
        %s263 = sand.u32 %s50, 1
        %s264 = scalar_lea.sflag [#allocation3], %s263
        %s265 = sand.u32 %s50, 1
        %s266 = smul.addr %s265, 6
        %s267 = scalar_lea.vmem [#allocation2], %s266
        %p268 = pneg %p63
        %p269 = pneg %p60
        %s270 = sand.u32 %s78, 1
        %s271 = scalar_lea.sflag [#allocation6], %s270
        %s272 = sand.u32 %s78, 1
        %s273 = smul.addr %s272, 80
        %s274 = scalar_lea.vmem [#allocation5], %s273
        %p275 = pneg %p91
        %p276 = pneg %p88
        %p277 = pneg %p119
        %p278 = pneg %p116
        %s279 = sand.u32 %s106, 1
        %s280 = scalar_lea.sflag [#allocation4], %s279
        %s281 = sand.u32 %s106, 1
        %s282 = scalar_lea.vmem [#allocation7], %s281
        %p283 = pneg %p147
        %p284 = pneg %p144
        %s285 = sand.u32 %s28, 1
        %s286 = scalar_lea.sflag [#allocation9], %s285
        %s287 = sand.u32 %s134, 1
        %s288 = smul.addr %s287, 24
        %s289 = scalar_lea.vmem [#allocation8], %s288
        %p290 = pneg %p175
        %p291 = pneg %p172
        %s292 = sand.u32 %s28, 1
        %s293 = scalar_lea.sflag [#allocation9], %s292
        %s294 = sand.u32 %s162, 1
        %s295 = smul.addr %s294, 24
        %s296 = scalar_lea.vmem [#allocation10], %s295
        %v297 = vld [vmem:[%s249] sm:$0x3]
        %s298 = scalar_lea.vmem %s249, 2 [#allocation2]
        %v299 = vld [vmem:[%s298] sm:$0x3]
        %s300 = scalar_lea.vmem %s249, 4 [#allocation2]
        %v301 = vld [vmem:[%s300] sm:$0x3]
        %s302 = scalar_lea.vmem %s258, 8 [#allocation5]
        %v303 = vld [vmem:[%s302] sm:$0x3]
        %v304 = vld [vmem:[%s302 + $0x2] sm:$0x3]
        %v305 = vld [vmem:[%s302 + $0x4] sm:$0x3]
        %v306 = vld [vmem:[%s302 + $0x6] sm:$0x3]
        %s307 = scalar_lea.vmem %s258, 16 [#allocation5]
        %v308 = vld [vmem:[%s307] sm:$0x3]
        %v309 = vld [vmem:[%s307 + $0x2] sm:$0x3]
        %v310 = vld [vmem:[%s307 + $0x4] sm:$0x3]
        %v311 = vld [vmem:[%s307 + $0x6] sm:$0x3]
        %v312 = vmul.f32 %v308, 0.6931472
        %v313 = vmul.f32 %v309, 0.6931472
        %v314 = vmul.f32 %v310, 0.6931472
        %v315 = vmul.f32 %v311, 0.6931472
        %v316 = vmax.f32 %v312, 0.0
        %v317 = vmax.f32 %v313, 0.0
        %v318 = vmax.f32 %v314, 0.0
        %v319 = vmax.f32 %v315, 0.0
        %v320 = vand.u32 2147483647, %v312
        %v321 = vand.u32 2147483647, %v313
        %v322 = vand.u32 2147483647, %v314
        %v323 = vand.u32 2147483647, %v315
        %v324 = vsub.f32 0.0, %v320
        %v325 = vsub.f32 0.0, %v321
        %v326 = vsub.f32 0.0, %v322
        %v327 = vsub.f32 0.0, %v323
        %v328 = vmul.f32 %v324, 1.442695
        %v329 = vpow.pop %v328
        %v330 = vmul.f32 %v325, 1.442695
        %v331 = vpow.pop %v330
        %v332 = vmul.f32 %v326, 1.442695
        %v333 = vpow.pop %v332
        %v334 = vmul.f32 %v327, 1.442695
        %v335 = vpow.pop %v334
        %v336 = vadd.f32 %v329, 1.0
        %v337 = vadd.f32 %v331, 1.0
        %v338 = vadd.f32 %v333, 1.0
        %v339 = vadd.f32 %v335, 1.0
        %v340 = vlog2.pop %v336
        %v341 = vmul.f32 %v340, 0.6931472
        %v342 = vlog2.pop %v337
        %v343 = vmul.f32 %v342, 0.6931472
        %v344 = vlog2.pop %v338
        %v345 = vmul.f32 %v344, 0.6931472
        %v346 = vlog2.pop %v339
        %v347 = vmul.f32 %v346, 0.6931472
        %v348 = vadd.f32 %v316, %v341
        %v349 = vadd.f32 %v317, %v343
        %v350 = vadd.f32 %v318, %v345
        %v351 = vadd.f32 %v319, %v347
        %v352 = vrcp.pop 0.6931472
        %v353 = vmul.f32 %v348, %v352
        %v354 = vmul.f32 %v349, %v352
        %v355 = vmul.f32 %v350, %v352
        %v356 = vmul.f32 %v351, %v352
        %v357 = vrcp.pop %v353
        %v358 = vmul.f32 1.0, %v357
        %v359 = vrcp.pop %v354
        %v360 = vmul.f32 1.0, %v359
        %v361 = vrcp.pop %v355
        %v362 = vmul.f32 1.0, %v361
        %v363 = vrcp.pop %v356
        %v364 = vmul.f32 1.0, %v363
        %v365 = vlog2.pop %v353
        %v366 = vmul.f32 %v365, 0.6931472
        %v367 = vlog2.pop %v354
        %v368 = vmul.f32 %v367, 0.6931472
        %v369 = vlog2.pop %v355
        %v370 = vmul.f32 %v369, 0.6931472
        %v371 = vlog2.pop %v356
        %v372 = vmul.f32 %v371, 0.6931472
        %v373 = vsub.f32 %v297, %v303
        %v374 = vsub.f32 %v297, %v304
        %v375 = vsub.f32 %v297, %v305
        %v376 = vsub.f32 %v297, %v306
        %v377 = vadd.f32 %v373, 0.003921569
        %v378 = vadd.f32 %v374, 0.003921569
        %v379 = vadd.f32 %v375, 0.003921569
        %v380 = vadd.f32 %v376, 0.003921569
        %v381 = vmul.f32 %v358, %v377
        %v382 = vmul.f32 %v360, %v378
        %v383 = vmul.f32 %v362, %v379
        %v384 = vmul.f32 %v364, %v380
        %v385 = vsub.f32 %v373, 0.003921569
        %v386 = vsub.f32 %v374, 0.003921569
        %v387 = vsub.f32 %v375, 0.003921569
        %v388 = vsub.f32 %v376, 0.003921569
        %v389 = vmul.f32 %v358, %v385
        %v390 = vmul.f32 %v360, %v386
        %v391 = vmul.f32 %v362, %v387
        %v392 = vmul.f32 %v364, %v388
        %v393 = vmax.f32 %v381, 0.0
        %v394 = vmax.f32 %v382, 0.0
        %v395 = vmax.f32 %v383, 0.0
        %v396 = vmax.f32 %v384, 0.0
        %v397 = vand.u32 2147483647, %v381
        %v398 = vand.u32 2147483647, %v382
        %v399 = vand.u32 2147483647, %v383
        %v400 = vand.u32 2147483647, %v384
        %v401 = vsub.f32 0.0, %v397
        %v402 = vsub.f32 0.0, %v398
        %v403 = vsub.f32 0.0, %v399
        %v404 = vsub.f32 0.0, %v400
        %v405 = vmul.f32 %v401, 1.442695
        %v406 = vpow.pop %v405
        %v407 = vmul.f32 %v402, 1.442695
        %v408 = vpow.pop %v407
        %v409 = vmul.f32 %v403, 1.442695
        %v410 = vpow.pop %v409
        %v411 = vmul.f32 %v404, 1.442695
        %v412 = vpow.pop %v411
        %v413 = vadd.f32 %v406, 1.0
        %v414 = vadd.f32 %v408, 1.0
        %v415 = vadd.f32 %v410, 1.0
        %v416 = vadd.f32 %v412, 1.0
        %v417 = vlog2.pop %v413
        %v418 = vmul.f32 %v417, 0.6931472
        %v419 = vlog2.pop %v414
        %v420 = vmul.f32 %v419, 0.6931472
        %v421 = vlog2.pop %v415
        %v422 = vmul.f32 %v421, 0.6931472
        %v423 = vlog2.pop %v416
        %v424 = vmul.f32 %v423, 0.6931472
        %v425 = vadd.f32 %v393, %v418
        %v426 = vadd.f32 %v394, %v420
        %v427 = vadd.f32 %v395, %v422
        %v428 = vadd.f32 %v396, %v424
        %v429 = vmax.f32 %v389, 0.0
        %v430 = vmax.f32 %v390, 0.0
        %v431 = vmax.f32 %v391, 0.0
        %v432 = vmax.f32 %v392, 0.0
        %v433 = vand.u32 2147483647, %v389
        %v434 = vand.u32 2147483647, %v390
        %v435 = vand.u32 2147483647, %v391
        %v436 = vand.u32 2147483647, %v392
        %v437 = vsub.f32 0.0, %v433
        %v438 = vsub.f32 0.0, %v434
        %v439 = vsub.f32 0.0, %v435
        %v440 = vsub.f32 0.0, %v436
        %v441 = vmul.f32 %v437, 1.442695
        %v442 = vpow.pop %v441
        %v443 = vmul.f32 %v438, 1.442695
        %v444 = vpow.pop %v443
        %v445 = vmul.f32 %v439, 1.442695
        %v446 = vpow.pop %v445
        %v447 = vmul.f32 %v440, 1.442695
        %v448 = vpow.pop %v447
        %v449 = vadd.f32 %v442, 1.0
        %v450 = vadd.f32 %v444, 1.0
        %v451 = vadd.f32 %v446, 1.0
        %v452 = vadd.f32 %v448, 1.0
        %v453 = vlog2.pop %v449
        %v454 = vmul.f32 %v453, 0.6931472
        %v455 = vlog2.pop %v450
        %v456 = vmul.f32 %v455, 0.6931472
        %v457 = vlog2.pop %v451
        %v458 = vmul.f32 %v457, 0.6931472
        %v459 = vlog2.pop %v452
        %v460 = vmul.f32 %v459, 0.6931472
        %v461 = vadd.f32 %v429, %v454
        %v462 = vadd.f32 %v430, %v456
        %v463 = vadd.f32 %v431, %v458
        %v464 = vadd.f32 %v432, %v460
        %v465 = vsub.f32 %v381, %v425
        %v466 = vsub.f32 %v382, %v426
        %v467 = vsub.f32 %v383, %v427
        %v468 = vsub.f32 %v384, %v428
        %v469 = vsub.f32 0.0, %v461
        %v470 = vsub.f32 0.0, %v462
        %v471 = vsub.f32 0.0, %v463
        %v472 = vsub.f32 0.0, %v464
        %v473 = vsub.f32 %v389, %v461
        %v474 = vsub.f32 %v390, %v462
        %v475 = vsub.f32 %v391, %v463
        %v476 = vsub.f32 %v392, %v464
        %v477 = vsub.f32 %v473, %v465
        %v478 = vsub.f32 %v474, %v466
        %v479 = vsub.f32 %v475, %v467
        %v480 = vsub.f32 %v476, %v468
        %v481 = vmul.f32 %v477, 1.442695
        %v482 = vpow.pop %v481
        %v483 = vmul.f32 %v478, 1.442695
        %v484 = vpow.pop %v483
        %v485 = vmul.f32 %v479, 1.442695
        %v486 = vpow.pop %v485
        %v487 = vmul.f32 %v480, 1.442695
        %v488 = vpow.pop %v487
        %v489 = vsub.f32 1.0, %v482
        %v490 = vsub.f32 1.0, %v484
        %v491 = vsub.f32 1.0, %v486
        %v492 = vsub.f32 1.0, %v488
        %v493 = vlog2.pop %v489
        %v494 = vmul.f32 %v493, 0.6931472
        %v495 = vlog2.pop %v490
        %v496 = vmul.f32 %v495, 0.6931472
        %v497 = vlog2.pop %v491
        %v498 = vmul.f32 %v497, 0.6931472
        %v499 = vlog2.pop %v492
        %v500 = vmul.f32 %v499, 0.6931472
        %v501 = vadd.f32 %v465, %v494
        %v502 = vadd.f32 %v466, %v496
        %v503 = vadd.f32 %v467, %v498
        %v504 = vadd.f32 %v468, %v500
        %v505 = vmul.f32 %v358, %v373
        %v506 = vmul.f32 %v360, %v374
        %v507 = vmul.f32 %v362, %v375
        %v508 = vmul.f32 %v364, %v376
        %v509 = vsub.f32 %v505, %v366
        %v510 = vsub.f32 %v506, %v368
        %v511 = vsub.f32 %v507, %v370
        %v512 = vsub.f32 %v508, %v372
        %v513 = vmax.f32 %v505, 0.0
        %v514 = vmax.f32 %v506, 0.0
        %v515 = vmax.f32 %v507, 0.0
        %v516 = vmax.f32 %v508, 0.0
        %v517 = vand.u32 2147483647, %v505
        %v518 = vand.u32 2147483647, %v506
        %v519 = vand.u32 2147483647, %v507
        %v520 = vand.u32 2147483647, %v508
        %v521 = vsub.f32 0.0, %v517
        %v522 = vsub.f32 0.0, %v518
        %v523 = vsub.f32 0.0, %v519
        %v524 = vsub.f32 0.0, %v520
        %v525 = vmul.f32 %v521, 1.442695
        %v526 = vpow.pop %v525
        %v527 = vmul.f32 %v522, 1.442695
        %v528 = vpow.pop %v527
        %v529 = vmul.f32 %v523, 1.442695
        %v530 = vpow.pop %v529
        %v531 = vmul.f32 %v524, 1.442695
        %v532 = vpow.pop %v531
        %v533 = vadd.f32 %v526, 1.0
        %v534 = vadd.f32 %v528, 1.0
        %v535 = vadd.f32 %v530, 1.0
        %v536 = vadd.f32 %v532, 1.0
        %v537 = vlog2.pop %v533
        %v538 = vmul.f32 %v537, 0.6931472
        %v539 = vlog2.pop %v534
        %v540 = vmul.f32 %v539, 0.6931472
        %v541 = vlog2.pop %v535
        %v542 = vmul.f32 %v541, 0.6931472
        %v543 = vlog2.pop %v536
        %v544 = vmul.f32 %v543, 0.6931472
        %v545 = vadd.f32 %v513, %v538
        %v546 = vadd.f32 %v514, %v540
        %v547 = vadd.f32 %v515, %v542
        %v548 = vadd.f32 %v516, %v544
        %v549 = vmul.f32 %v545, 2.0
        %v550 = vmul.f32 %v546, 2.0
        %v551 = vmul.f32 %v547, 2.0
        %v552 = vmul.f32 %v548, 2.0
        %v553 = vsub.f32 %v509, %v549
        %v554 = vsub.f32 %v510, %v550
        %v555 = vsub.f32 %v511, %v551
        %v556 = vsub.f32 %v512, %v552
        %vm557 = vcmp.eq.f32.partialorder %v297, -1.0
        %vm558 = vcmp.eq.f32.partialorder %v297, 1.0
        %vm559 = vcmp.gt.f32.partialorder %v501, -11.512925
        %vm560 = vcmp.gt.f32.partialorder %v502, -11.512925
        %vm561 = vcmp.gt.f32.partialorder %v503, -11.512925
        %vm562 = vcmp.gt.f32.partialorder %v504, -11.512925
        %v563 = vsub.f32 %v553, 4.8481164
        %v564 = vsub.f32 %v554, 4.8481164
        %v565 = vsub.f32 %v555, 4.8481164
        %v566 = vsub.f32 %v556, 4.8481164
        %v567 = vsel %vm559, %v501, %v563
        %v568 = vsel %vm560, %v502, %v564
        %v569 = vsel %vm561, %v503, %v565
        %v570 = vsel %vm562, %v504, %v566
        %v571 = vsel %vm558, 1, 0
        %vm572 = vcmp.eq.s32.totalorder %v571, 1
        %v573 = vsel %vm572, %v469, %v567
        %v574 = vsel %vm572, %v470, %v568
        %v575 = vsel %vm572, %v471, %v569
        %v576 = vsel %vm572, %v472, %v570
        %v577 = vsel %vm557, 1, 0
        %vm578 = vcmp.eq.s32.totalorder %v577, 1
        %v579 = vsel %vm578, %v465, %v573
        %v580 = vsel %vm578, %v466, %v574
        %v581 = vsel %vm578, %v467, %v575
        %v582 = vsel %vm578, %v468, %v576
        %583 = vst [vmem:[%s289] sm:$0x3] %v303
        %584 = vst [vmem:[%s289 + $0x2] sm:$0x3] %v304
        %585 = vst [vmem:[%s289 + $0x4] sm:$0x3] %v305
        %586 = vst [vmem:[%s289 + $0x6] sm:$0x3] %v306
        %587 = vst [vmem:[%s296] sm:$0x3] %v366
        %588 = vst [vmem:[%s296 + $0x2] sm:$0x3] %v368
        %589 = vst [vmem:[%s296 + $0x4] sm:$0x3] %v370
        %590 = vst [vmem:[%s296 + $0x6] sm:$0x3] %v372
        %s591 = scalar_lea.vmem %s258, 32 [#allocation5]
        %v592 = vld [vmem:[%s591] sm:$0x3]
        %v593 = vld [vmem:[%s591 + $0x2] sm:$0x3]
        %v594 = vld [vmem:[%s591 + $0x4] sm:$0x3]
        %v595 = vld [vmem:[%s591 + $0x6] sm:$0x3]
        %s596 = scalar_lea.vmem %s258, 24 [#allocation5]
        %v597 = vld [vmem:[%s596] sm:$0x3]
        %v598 = vld [vmem:[%s596 + $0x2] sm:$0x3]
        %v599 = vld [vmem:[%s596 + $0x4] sm:$0x3]
        %v600 = vld [vmem:[%s596 + $0x6] sm:$0x3]
        %v601 = vtanh.pop %v597
        %v602 = vtanh.pop %v598
        %v603 = vtanh.pop %v599
        %v604 = vtanh.pop %v600
        %v605 = vmul.f32 %v601, %v297
        %v606 = vmul.f32 %v602, %v297
        %v607 = vmul.f32 %v603, %v297
        %v608 = vmul.f32 %v604, %v297
        %v609 = vadd.f32 %v592, %v605
        %v610 = vadd.f32 %v593, %v606
        %v611 = vadd.f32 %v594, %v607
        %v612 = vadd.f32 %v595, %v608
        %s613 = scalar_lea.vmem %s258, 40 [#allocation5]
        %v614 = vld [vmem:[%s613] sm:$0x3]
        %v615 = vld [vmem:[%s613 + $0x2] sm:$0x3]
        %v616 = vld [vmem:[%s613 + $0x4] sm:$0x3]
        %v617 = vld [vmem:[%s613 + $0x6] sm:$0x3]
        %v618 = vmul.f32 %v614, 0.6931472
        %v619 = vmul.f32 %v615, 0.6931472
        %v620 = vmul.f32 %v616, 0.6931472
        %v621 = vmul.f32 %v617, 0.6931472
        %v622 = vmax.f32 %v618, 0.0
        %v623 = vmax.f32 %v619, 0.0
        %v624 = vmax.f32 %v620, 0.0
        %v625 = vmax.f32 %v621, 0.0
        %v626 = vand.u32 2147483647, %v618
        %v627 = vand.u32 2147483647, %v619
        %v628 = vand.u32 2147483647, %v620
        %v629 = vand.u32 2147483647, %v621
        %v630 = vsub.f32 0.0, %v626
        %v631 = vsub.f32 0.0, %v627
        %v632 = vsub.f32 0.0, %v628
        %v633 = vsub.f32 0.0, %v629
        %v634 = vmul.f32 %v630, 1.442695
        %v635 = vpow.pop %v634
        %v636 = vmul.f32 %v631, 1.442695
        %v637 = vpow.pop %v636
        %v638 = vmul.f32 %v632, 1.442695
        %v639 = vpow.pop %v638
        %v640 = vmul.f32 %v633, 1.442695
        %v641 = vpow.pop %v640
        %v642 = vadd.f32 %v635, 1.0
        %v643 = vadd.f32 %v637, 1.0
        %v644 = vadd.f32 %v639, 1.0
        %v645 = vadd.f32 %v641, 1.0
        %v646 = vlog2.pop %v642
        %v647 = vmul.f32 %v646, 0.6931472
        %v648 = vlog2.pop %v643
        %v649 = vmul.f32 %v648, 0.6931472
        %v650 = vlog2.pop %v644
        %v651 = vmul.f32 %v650, 0.6931472
        %v652 = vlog2.pop %v645
        %v653 = vmul.f32 %v652, 0.6931472
        %v654 = vadd.f32 %v622, %v647
        %v655 = vadd.f32 %v623, %v649
        %v656 = vadd.f32 %v624, %v651
        %v657 = vadd.f32 %v625, %v653
        %v658 = vmul.f32 %v654, %v352
        %v659 = vmul.f32 %v655, %v352
        %v660 = vmul.f32 %v656, %v352
        %v661 = vmul.f32 %v657, %v352
        %v662 = vrcp.pop %v658
        %v663 = vmul.f32 1.0, %v662
        %v664 = vrcp.pop %v659
        %v665 = vmul.f32 1.0, %v664
        %v666 = vrcp.pop %v660
        %v667 = vmul.f32 1.0, %v666
        %v668 = vrcp.pop %v661
        %v669 = vmul.f32 1.0, %v668
        %v670 = vlog2.pop %v658
        %v671 = vmul.f32 %v670, 0.6931472
        %v672 = vlog2.pop %v659
        %v673 = vmul.f32 %v672, 0.6931472
        %v674 = vlog2.pop %v660
        %v675 = vmul.f32 %v674, 0.6931472
        %v676 = vlog2.pop %v661
        %v677 = vmul.f32 %v676, 0.6931472
        %v678 = vsub.f32 %v299, %v609
        %v679 = vsub.f32 %v299, %v610
        %v680 = vsub.f32 %v299, %v611
        %v681 = vsub.f32 %v299, %v612
        %v682 = vadd.f32 %v678, 0.003921569
        %v683 = vadd.f32 %v679, 0.003921569
        %v684 = vadd.f32 %v680, 0.003921569
        %v685 = vadd.f32 %v681, 0.003921569
        %v686 = vmul.f32 %v663, %v682
        %v687 = vmul.f32 %v665, %v683
        %v688 = vmul.f32 %v667, %v684
        %v689 = vmul.f32 %v669, %v685
        %v690 = vsub.f32 %v678, 0.003921569
        %v691 = vsub.f32 %v679, 0.003921569
        %v692 = vsub.f32 %v680, 0.003921569
        %v693 = vsub.f32 %v681, 0.003921569
        %v694 = vmul.f32 %v663, %v690
        %v695 = vmul.f32 %v665, %v691
        %v696 = vmul.f32 %v667, %v692
        %v697 = vmul.f32 %v669, %v693
        %v698 = vmax.f32 %v686, 0.0
        %v699 = vmax.f32 %v687, 0.0
        %v700 = vmax.f32 %v688, 0.0
        %v701 = vmax.f32 %v689, 0.0
        %v702 = vand.u32 2147483647, %v686
        %v703 = vand.u32 2147483647, %v687
        %v704 = vand.u32 2147483647, %v688
        %v705 = vand.u32 2147483647, %v689
        %v706 = vsub.f32 0.0, %v702
        %v707 = vsub.f32 0.0, %v703
        %v708 = vsub.f32 0.0, %v704
        %v709 = vsub.f32 0.0, %v705
        %v710 = vmul.f32 %v706, 1.442695
        %v711 = vpow.pop %v710
        %v712 = vmul.f32 %v707, 1.442695
        %v713 = vpow.pop %v712
        %v714 = vmul.f32 %v708, 1.442695
        %v715 = vpow.pop %v714
        %v716 = vmul.f32 %v709, 1.442695
        %v717 = vpow.pop %v716
        %v718 = vadd.f32 %v711, 1.0
        %v719 = vadd.f32 %v713, 1.0
        %v720 = vadd.f32 %v715, 1.0
        %v721 = vadd.f32 %v717, 1.0
        %v722 = vlog2.pop %v718
        %v723 = vmul.f32 %v722, 0.6931472
        %v724 = vlog2.pop %v719
        %v725 = vmul.f32 %v724, 0.6931472
        %v726 = vlog2.pop %v720
        %v727 = vmul.f32 %v726, 0.6931472
        %v728 = vlog2.pop %v721
        %v729 = vmul.f32 %v728, 0.6931472
        %v730 = vadd.f32 %v698, %v723
        %v731 = vadd.f32 %v699, %v725
        %v732 = vadd.f32 %v700, %v727
        %v733 = vadd.f32 %v701, %v729
        %v734 = vmax.f32 %v694, 0.0
        %v735 = vmax.f32 %v695, 0.0
        %v736 = vmax.f32 %v696, 0.0
        %v737 = vmax.f32 %v697, 0.0
        %v738 = vand.u32 2147483647, %v694
        %v739 = vand.u32 2147483647, %v695
        %v740 = vand.u32 2147483647, %v696
        %v741 = vand.u32 2147483647, %v697
        %v742 = vsub.f32 0.0, %v738
        %v743 = vsub.f32 0.0, %v739
        %v744 = vsub.f32 0.0, %v740
        %v745 = vsub.f32 0.0, %v741
        %v746 = vmul.f32 %v742, 1.442695
        %v747 = vpow.pop %v746
        %v748 = vmul.f32 %v743, 1.442695
        %v749 = vpow.pop %v748
        %v750 = vmul.f32 %v744, 1.442695
        %v751 = vpow.pop %v750
        %v752 = vmul.f32 %v745, 1.442695
        %v753 = vpow.pop %v752
        %v754 = vadd.f32 %v747, 1.0
        %v755 = vadd.f32 %v749, 1.0
        %v756 = vadd.f32 %v751, 1.0
        %v757 = vadd.f32 %v753, 1.0
        %v758 = vlog2.pop %v754
        %v759 = vmul.f32 %v758, 0.6931472
        %v760 = vlog2.pop %v755
        %v761 = vmul.f32 %v760, 0.6931472
        %v762 = vlog2.pop %v756
        %v763 = vmul.f32 %v762, 0.6931472
        %v764 = vlog2.pop %v757
        %v765 = vmul.f32 %v764, 0.6931472
        %v766 = vadd.f32 %v734, %v759
        %v767 = vadd.f32 %v735, %v761
        %v768 = vadd.f32 %v736, %v763
        %v769 = vadd.f32 %v737, %v765
        %v770 = vsub.f32 %v686, %v730
        %v771 = vsub.f32 %v687, %v731
        %v772 = vsub.f32 %v688, %v732
        %v773 = vsub.f32 %v689, %v733
        %v774 = vsub.f32 0.0, %v766
        %v775 = vsub.f32 0.0, %v767
        %v776 = vsub.f32 0.0, %v768
        %v777 = vsub.f32 0.0, %v769
        %v778 = vsub.f32 %v694, %v766
        %v779 = vsub.f32 %v695, %v767
        %v780 = vsub.f32 %v696, %v768
        %v781 = vsub.f32 %v697, %v769
        %v782 = vsub.f32 %v778, %v770
        %v783 = vsub.f32 %v779, %v771
        %v784 = vsub.f32 %v780, %v772
        %v785 = vsub.f32 %v781, %v773
        %v786 = vmul.f32 %v782, 1.442695
        %v787 = vpow.pop %v786
        %v788 = vmul.f32 %v783, 1.442695
        %v789 = vpow.pop %v788
        %v790 = vmul.f32 %v784, 1.442695
        %v791 = vpow.pop %v790
        %v792 = vmul.f32 %v785, 1.442695
        %v793 = vpow.pop %v792
        %v794 = vsub.f32 1.0, %v787
        %v795 = vsub.f32 1.0, %v789
        %v796 = vsub.f32 1.0, %v791
        %v797 = vsub.f32 1.0, %v793
        %v798 = vlog2.pop %v794
        %v799 = vmul.f32 %v798, 0.6931472
        %v800 = vlog2.pop %v795
        %v801 = vmul.f32 %v800, 0.6931472
        %v802 = vlog2.pop %v796
        %v803 = vmul.f32 %v802, 0.6931472
        %v804 = vlog2.pop %v797
        %v805 = vmul.f32 %v804, 0.6931472
        %v806 = vadd.f32 %v770, %v799
        %v807 = vadd.f32 %v771, %v801
        %v808 = vadd.f32 %v772, %v803
        %v809 = vadd.f32 %v773, %v805
        %v810 = vmul.f32 %v663, %v678
        %v811 = vmul.f32 %v665, %v679
        %v812 = vmul.f32 %v667, %v680
        %v813 = vmul.f32 %v669, %v681
        %v814 = vsub.f32 %v810, %v671
        %v815 = vsub.f32 %v811, %v673
        %v816 = vsub.f32 %v812, %v675
        %v817 = vsub.f32 %v813, %v677
        %v818 = vmax.f32 %v810, 0.0
        %v819 = vmax.f32 %v811, 0.0
        %v820 = vmax.f32 %v812, 0.0
        %v821 = vmax.f32 %v813, 0.0
        %v822 = vand.u32 2147483647, %v810
        %v823 = vand.u32 2147483647, %v811
        %v824 = vand.u32 2147483647, %v812
        %v825 = vand.u32 2147483647, %v813
        %v826 = vsub.f32 0.0, %v822
        %v827 = vsub.f32 0.0, %v823
        %v828 = vsub.f32 0.0, %v824
        %v829 = vsub.f32 0.0, %v825
        %v830 = vmul.f32 %v826, 1.442695
        %v831 = vpow.pop %v830
        %v832 = vmul.f32 %v827, 1.442695
        %v833 = vpow.pop %v832
        %v834 = vmul.f32 %v828, 1.442695
        %v835 = vpow.pop %v834
        %v836 = vmul.f32 %v829, 1.442695
        %v837 = vpow.pop %v836
        %v838 = vadd.f32 %v831, 1.0
        %v839 = vadd.f32 %v833, 1.0
        %v840 = vadd.f32 %v835, 1.0
        %v841 = vadd.f32 %v837, 1.0
        %v842 = vlog2.pop %v838
        %v843 = vmul.f32 %v842, 0.6931472
        %v844 = vlog2.pop %v839
        %v845 = vmul.f32 %v844, 0.6931472
        %v846 = vlog2.pop %v840
        %v847 = vmul.f32 %v846, 0.6931472
        %v848 = vlog2.pop %v841
        %v849 = vmul.f32 %v848, 0.6931472
        %v850 = vadd.f32 %v818, %v843
        %v851 = vadd.f32 %v819, %v845
        %v852 = vadd.f32 %v820, %v847
        %v853 = vadd.f32 %v821, %v849
        %v854 = vmul.f32 %v850, 2.0
        %v855 = vmul.f32 %v851, 2.0
        %v856 = vmul.f32 %v852, 2.0
        %v857 = vmul.f32 %v853, 2.0
        %v858 = vsub.f32 %v814, %v854
        %v859 = vsub.f32 %v815, %v855
        %v860 = vsub.f32 %v816, %v856
        %v861 = vsub.f32 %v817, %v857
        %vm862 = vcmp.eq.f32.partialorder %v299, -1.0
        %vm863 = vcmp.eq.f32.partialorder %v299, 1.0
        %vm864 = vcmp.gt.f32.partialorder %v806, -11.512925
        %vm865 = vcmp.gt.f32.partialorder %v807, -11.512925
        %vm866 = vcmp.gt.f32.partialorder %v808, -11.512925
        %vm867 = vcmp.gt.f32.partialorder %v809, -11.512925
        %v868 = vsub.f32 %v858, 4.8481164
        %v869 = vsub.f32 %v859, 4.8481164
        %v870 = vsub.f32 %v860, 4.8481164
        %v871 = vsub.f32 %v861, 4.8481164
        %v872 = vsel %vm864, %v806, %v868
        %v873 = vsel %vm865, %v807, %v869
        %v874 = vsel %vm866, %v808, %v870
        %v875 = vsel %vm867, %v809, %v871
        %v876 = vsel %vm863, 1, 0
        %vm877 = vcmp.eq.s32.totalorder %v876, 1
        %v878 = vsel %vm877, %v774, %v872
        %v879 = vsel %vm877, %v775, %v873
        %v880 = vsel %vm877, %v776, %v874
        %v881 = vsel %vm877, %v777, %v875
        %v882 = vsel %vm862, 1, 0
        %vm883 = vcmp.eq.s32.totalorder %v882, 1
        %v884 = vsel %vm883, %v770, %v878
        %v885 = vsel %vm883, %v771, %v879
        %v886 = vsel %vm883, %v772, %v880
        %v887 = vsel %vm883, %v773, %v881
        %s888 = scalar_lea.vmem %s289, 8 [#allocation8]
        %889 = vst [vmem:[%s888] sm:$0x3] %v592
        %890 = vst [vmem:[%s888 + $0x2] sm:$0x3] %v593
        %891 = vst [vmem:[%s888 + $0x4] sm:$0x3] %v594
        %892 = vst [vmem:[%s888 + $0x6] sm:$0x3] %v595
        %s893 = scalar_lea.vmem %s296, 8 [#allocation10]
        %894 = vst [vmem:[%s893] sm:$0x3] %v671
        %895 = vst [vmem:[%s893 + $0x2] sm:$0x3] %v673
        %896 = vst [vmem:[%s893 + $0x4] sm:$0x3] %v675
        %897 = vst [vmem:[%s893 + $0x6] sm:$0x3] %v677
        %v898 = vadd.f32 %v579, %v884
        %v899 = vadd.f32 %v580, %v885
        %v900 = vadd.f32 %v581, %v886
        %v901 = vadd.f32 %v582, %v887
        %s902 = scalar_lea.vmem %s258, 56 [#allocation5]
        %v903 = vld [vmem:[%s902] sm:$0x3]
        %v904 = vld [vmem:[%s902 + $0x2] sm:$0x3]
        %v905 = vld [vmem:[%s902 + $0x4] sm:$0x3]
        %v906 = vld [vmem:[%s902 + $0x6] sm:$0x3]
        %s907 = scalar_lea.vmem %s258, 48 [#allocation5]
        %v908 = vld [vmem:[%s907] sm:$0x3]
        %v909 = vld [vmem:[%s907 + $0x2] sm:$0x3]
        %v910 = vld [vmem:[%s907 + $0x4] sm:$0x3]
        %v911 = vld [vmem:[%s907 + $0x6] sm:$0x3]
        %v912 = vtanh.pop %v908
        %v913 = vtanh.pop %v909
        %v914 = vtanh.pop %v910
        %v915 = vtanh.pop %v911
        %s916 = scalar_lea.vmem %s258, 72 [#allocation5]
        %v917 = vld [vmem:[%s916] sm:$0x3]
        %v918 = vld [vmem:[%s916 + $0x2] sm:$0x3]
        %v919 = vld [vmem:[%s916 + $0x4] sm:$0x3]
        %v920 = vld [vmem:[%s916 + $0x6] sm:$0x3]
        %v921 = vtanh.pop %v917
        %v922 = vtanh.pop %v918
        %v923 = vtanh.pop %v919
        %v924 = vtanh.pop %v920
        %v925 = vmul.f32 %v912, %v297
        %v926 = vmul.f32 %v913, %v297
        %v927 = vmul.f32 %v914, %v297
        %v928 = vmul.f32 %v915, %v297
        %v929 = vadd.f32 %v903, %v925
        %v930 = vadd.f32 %v904, %v926
        %v931 = vadd.f32 %v905, %v927
        %v932 = vadd.f32 %v906, %v928
        %v933 = vmul.f32 %v921, %v299
        %v934 = vmul.f32 %v922, %v299
        %v935 = vmul.f32 %v923, %v299
        %v936 = vmul.f32 %v924, %v299
        %v937 = vadd.f32 %v929, %v933
        %v938 = vadd.f32 %v930, %v934
        %v939 = vadd.f32 %v931, %v935
        %v940 = vadd.f32 %v932, %v936
        %s941 = scalar_lea.vmem %s258, 64 [#allocation5]
        %v942 = vld [vmem:[%s941] sm:$0x3]
        %v943 = vld [vmem:[%s941 + $0x2] sm:$0x3]
        %v944 = vld [vmem:[%s941 + $0x4] sm:$0x3]
        %v945 = vld [vmem:[%s941 + $0x6] sm:$0x3]
        %v946 = vmul.f32 %v942, 0.6931472
        %v947 = vmul.f32 %v943, 0.6931472
        %v948 = vmul.f32 %v944, 0.6931472
        %v949 = vmul.f32 %v945, 0.6931472
        %v950 = vmax.f32 %v946, 0.0
        %v951 = vmax.f32 %v947, 0.0
        %v952 = vmax.f32 %v948, 0.0
        %v953 = vmax.f32 %v949, 0.0
        %v954 = vand.u32 2147483647, %v946
        %v955 = vand.u32 2147483647, %v947
        %v956 = vand.u32 2147483647, %v948
        %v957 = vand.u32 2147483647, %v949
        %v958 = vsub.f32 0.0, %v954
        %v959 = vsub.f32 0.0, %v955
        %v960 = vsub.f32 0.0, %v956
        %v961 = vsub.f32 0.0, %v957
        %v962 = vmul.f32 %v958, 1.442695
        %v963 = vpow.pop %v962
        %v964 = vmul.f32 %v959, 1.442695
        %v965 = vpow.pop %v964
        %v966 = vmul.f32 %v960, 1.442695
        %v967 = vpow.pop %v966
        %v968 = vmul.f32 %v961, 1.442695
        %v969 = vpow.pop %v968
        %v970 = vadd.f32 %v963, 1.0
        %v971 = vadd.f32 %v965, 1.0
        %v972 = vadd.f32 %v967, 1.0
        %v973 = vadd.f32 %v969, 1.0
        %v974 = vlog2.pop %v970
        %v975 = vmul.f32 %v974, 0.6931472
        %v976 = vlog2.pop %v971
        %v977 = vmul.f32 %v976, 0.6931472
        %v978 = vlog2.pop %v972
        %v979 = vmul.f32 %v978, 0.6931472
        %v980 = vlog2.pop %v973
        %v981 = vmul.f32 %v980, 0.6931472
        %v982 = vadd.f32 %v950, %v975
        %v983 = vadd.f32 %v951, %v977
        %v984 = vadd.f32 %v952, %v979
        %v985 = vadd.f32 %v953, %v981
        %v986 = vmul.f32 %v982, %v352
        %v987 = vmul.f32 %v983, %v352
        %v988 = vmul.f32 %v984, %v352
        %v989 = vmul.f32 %v985, %v352
        %v990 = vrcp.pop %v986
        %v991 = vmul.f32 1.0, %v990
        %v992 = vrcp.pop %v987
        %v993 = vmul.f32 1.0, %v992
        %v994 = vrcp.pop %v988
        %v995 = vmul.f32 1.0, %v994
        %v996 = vrcp.pop %v989
        %v997 = vmul.f32 1.0, %v996
        %v998 = vlog2.pop %v986
        %v999 = vmul.f32 %v998, 0.6931472
        %v1000 = vlog2.pop %v987
        %v1001 = vmul.f32 %v1000, 0.6931472
        %v1002 = vlog2.pop %v988
        %v1003 = vmul.f32 %v1002, 0.6931472
        %v1004 = vlog2.pop %v989
        %v1005 = vmul.f32 %v1004, 0.6931472
        %v1006 = vsub.f32 %v301, %v937
        %v1007 = vsub.f32 %v301, %v938
        %v1008 = vsub.f32 %v301, %v939
        %v1009 = vsub.f32 %v301, %v940
        %v1010 = vadd.f32 %v1006, 0.003921569
        %v1011 = vadd.f32 %v1007, 0.003921569
        %v1012 = vadd.f32 %v1008, 0.003921569
        %v1013 = vadd.f32 %v1009, 0.003921569
        %v1014 = vmul.f32 %v991, %v1010
        %v1015 = vmul.f32 %v993, %v1011
        %v1016 = vmul.f32 %v995, %v1012
        %v1017 = vmul.f32 %v997, %v1013
        %v1018 = vsub.f32 %v1006, 0.003921569
        %v1019 = vsub.f32 %v1007, 0.003921569
        %v1020 = vsub.f32 %v1008, 0.003921569
        %v1021 = vsub.f32 %v1009, 0.003921569
        %v1022 = vmul.f32 %v991, %v1018
        %v1023 = vmul.f32 %v993, %v1019
        %v1024 = vmul.f32 %v995, %v1020
        %v1025 = vmul.f32 %v997, %v1021
        %v1026 = vmax.f32 %v1014, 0.0
        %v1027 = vmax.f32 %v1015, 0.0
        %v1028 = vmax.f32 %v1016, 0.0
        %v1029 = vmax.f32 %v1017, 0.0
        %v1030 = vand.u32 2147483647, %v1014
        %v1031 = vand.u32 2147483647, %v1015
        %v1032 = vand.u32 2147483647, %v1016
        %v1033 = vand.u32 2147483647, %v1017
        %v1034 = vsub.f32 0.0, %v1030
        %v1035 = vsub.f32 0.0, %v1031
        %v1036 = vsub.f32 0.0, %v1032
        %v1037 = vsub.f32 0.0, %v1033
        %v1038 = vmul.f32 %v1034, 1.442695
        %v1039 = vpow.pop %v1038
        %v1040 = vmul.f32 %v1035, 1.442695
        %v1041 = vpow.pop %v1040
        %v1042 = vmul.f32 %v1036, 1.442695
        %v1043 = vpow.pop %v1042
        %v1044 = vmul.f32 %v1037, 1.442695
        %v1045 = vpow.pop %v1044
        %v1046 = vadd.f32 %v1039, 1.0
        %v1047 = vadd.f32 %v1041, 1.0
        %v1048 = vadd.f32 %v1043, 1.0
        %v1049 = vadd.f32 %v1045, 1.0
        %v1050 = vlog2.pop %v1046
        %v1051 = vmul.f32 %v1050, 0.6931472
        %v1052 = vlog2.pop %v1047
        %v1053 = vmul.f32 %v1052, 0.6931472
        %v1054 = vlog2.pop %v1048
        %v1055 = vmul.f32 %v1054, 0.6931472
        %v1056 = vlog2.pop %v1049
        %v1057 = vmul.f32 %v1056, 0.6931472
        %v1058 = vadd.f32 %v1026, %v1051
        %v1059 = vadd.f32 %v1027, %v1053
        %v1060 = vadd.f32 %v1028, %v1055
        %v1061 = vadd.f32 %v1029, %v1057
        %v1062 = vmax.f32 %v1022, 0.0
        %v1063 = vmax.f32 %v1023, 0.0
        %v1064 = vmax.f32 %v1024, 0.0
        %v1065 = vmax.f32 %v1025, 0.0
        %v1066 = vand.u32 2147483647, %v1022
        %v1067 = vand.u32 2147483647, %v1023
        %v1068 = vand.u32 2147483647, %v1024
        %v1069 = vand.u32 2147483647, %v1025
        %v1070 = vsub.f32 0.0, %v1066
        %v1071 = vsub.f32 0.0, %v1067
        %v1072 = vsub.f32 0.0, %v1068
        %v1073 = vsub.f32 0.0, %v1069
        %v1074 = vmul.f32 %v1070, 1.442695
        %v1075 = vpow.pop %v1074
        %v1076 = vmul.f32 %v1071, 1.442695
        %v1077 = vpow.pop %v1076
        %v1078 = vmul.f32 %v1072, 1.442695
        %v1079 = vpow.pop %v1078
        %v1080 = vmul.f32 %v1073, 1.442695
        %v1081 = vpow.pop %v1080
        %v1082 = vadd.f32 %v1075, 1.0
        %v1083 = vadd.f32 %v1077, 1.0
        %v1084 = vadd.f32 %v1079, 1.0
        %v1085 = vadd.f32 %v1081, 1.0
        %v1086 = vlog2.pop %v1082
        %v1087 = vmul.f32 %v1086, 0.6931472
        %v1088 = vlog2.pop %v1083
        %v1089 = vmul.f32 %v1088, 0.6931472
        %v1090 = vlog2.pop %v1084
        %v1091 = vmul.f32 %v1090, 0.6931472
        %v1092 = vlog2.pop %v1085
        %v1093 = vmul.f32 %v1092, 0.6931472
        %v1094 = vadd.f32 %v1062, %v1087
        %v1095 = vadd.f32 %v1063, %v1089
        %v1096 = vadd.f32 %v1064, %v1091
        %v1097 = vadd.f32 %v1065, %v1093
        %v1098 = vsub.f32 %v1014, %v1058
        %v1099 = vsub.f32 %v1015, %v1059
        %v1100 = vsub.f32 %v1016, %v1060
        %v1101 = vsub.f32 %v1017, %v1061
        %v1102 = vsub.f32 0.0, %v1094
        %v1103 = vsub.f32 0.0, %v1095
        %v1104 = vsub.f32 0.0, %v1096
        %v1105 = vsub.f32 0.0, %v1097
        %v1106 = vsub.f32 %v1022, %v1094
        %v1107 = vsub.f32 %v1023, %v1095
        %v1108 = vsub.f32 %v1024, %v1096
        %v1109 = vsub.f32 %v1025, %v1097
        %v1110 = vsub.f32 %v1106, %v1098
        %v1111 = vsub.f32 %v1107, %v1099
        %v1112 = vsub.f32 %v1108, %v1100
        %v1113 = vsub.f32 %v1109, %v1101
        %v1114 = vmul.f32 %v1110, 1.442695
        %v1115 = vpow.pop %v1114
        %v1116 = vmul.f32 %v1111, 1.442695
        %v1117 = vpow.pop %v1116
        %v1118 = vmul.f32 %v1112, 1.442695
        %v1119 = vpow.pop %v1118
        %v1120 = vmul.f32 %v1113, 1.442695
        %v1121 = vpow.pop %v1120
        %v1122 = vsub.f32 1.0, %v1115
        %v1123 = vsub.f32 1.0, %v1117
        %v1124 = vsub.f32 1.0, %v1119
        %v1125 = vsub.f32 1.0, %v1121
        %v1126 = vlog2.pop %v1122
        %v1127 = vmul.f32 %v1126, 0.6931472
        %v1128 = vlog2.pop %v1123
        %v1129 = vmul.f32 %v1128, 0.6931472
        %v1130 = vlog2.pop %v1124
        %v1131 = vmul.f32 %v1130, 0.6931472
        %v1132 = vlog2.pop %v1125
        %v1133 = vmul.f32 %v1132, 0.6931472
        %v1134 = vadd.f32 %v1098, %v1127
        %v1135 = vadd.f32 %v1099, %v1129
        %v1136 = vadd.f32 %v1100, %v1131
        %v1137 = vadd.f32 %v1101, %v1133
        %v1138 = vmul.f32 %v991, %v1006
        %v1139 = vmul.f32 %v993, %v1007
        %v1140 = vmul.f32 %v995, %v1008
        %v1141 = vmul.f32 %v997, %v1009
        %v1142 = vsub.f32 %v1138, %v999
        %v1143 = vsub.f32 %v1139, %v1001
        %v1144 = vsub.f32 %v1140, %v1003
        %v1145 = vsub.f32 %v1141, %v1005
        %v1146 = vmax.f32 %v1138, 0.0
        %v1147 = vmax.f32 %v1139, 0.0
        %v1148 = vmax.f32 %v1140, 0.0
        %v1149 = vmax.f32 %v1141, 0.0
        %v1150 = vand.u32 2147483647, %v1138
        %v1151 = vand.u32 2147483647, %v1139
        %v1152 = vand.u32 2147483647, %v1140
        %v1153 = vand.u32 2147483647, %v1141
        %v1154 = vsub.f32 0.0, %v1150
        %v1155 = vsub.f32 0.0, %v1151
        %v1156 = vsub.f32 0.0, %v1152
        %v1157 = vsub.f32 0.0, %v1153
        %v1158 = vmul.f32 %v1154, 1.442695
        %v1159 = vpow.pop %v1158
        %v1160 = vmul.f32 %v1155, 1.442695
        %v1161 = vpow.pop %v1160
        %v1162 = vmul.f32 %v1156, 1.442695
        %v1163 = vpow.pop %v1162
        %v1164 = vmul.f32 %v1157, 1.442695
        %v1165 = vpow.pop %v1164
        %v1166 = vadd.f32 %v1159, 1.0
        %v1167 = vadd.f32 %v1161, 1.0
        %v1168 = vadd.f32 %v1163, 1.0
        %v1169 = vadd.f32 %v1165, 1.0
        %v1170 = vlog2.pop %v1166
        %v1171 = vmul.f32 %v1170, 0.6931472
        %v1172 = vlog2.pop %v1167
        %v1173 = vmul.f32 %v1172, 0.6931472
        %v1174 = vlog2.pop %v1168
        %v1175 = vmul.f32 %v1174, 0.6931472
        %v1176 = vlog2.pop %v1169
        %v1177 = vmul.f32 %v1176, 0.6931472
        %v1178 = vadd.f32 %v1146, %v1171
        %v1179 = vadd.f32 %v1147, %v1173
        %v1180 = vadd.f32 %v1148, %v1175
        %v1181 = vadd.f32 %v1149, %v1177
        %v1182 = vmul.f32 %v1178, 2.0
        %v1183 = vmul.f32 %v1179, 2.0
        %v1184 = vmul.f32 %v1180, 2.0
        %v1185 = vmul.f32 %v1181, 2.0
        %v1186 = vsub.f32 %v1142, %v1182
        %v1187 = vsub.f32 %v1143, %v1183
        %v1188 = vsub.f32 %v1144, %v1184
        %v1189 = vsub.f32 %v1145, %v1185
        %vm1190 = vcmp.eq.f32.partialorder %v301, -1.0
        %vm1191 = vcmp.eq.f32.partialorder %v301, 1.0
        %vm1192 = vcmp.gt.f32.partialorder %v1134, -11.512925
        %vm1193 = vcmp.gt.f32.partialorder %v1135, -11.512925
        %vm1194 = vcmp.gt.f32.partialorder %v1136, -11.512925
        %vm1195 = vcmp.gt.f32.partialorder %v1137, -11.512925
        %v1196 = vsub.f32 %v1186, 4.8481164
        %v1197 = vsub.f32 %v1187, 4.8481164
        %v1198 = vsub.f32 %v1188, 4.8481164
        %v1199 = vsub.f32 %v1189, 4.8481164
        %v1200 = vsel %vm1192, %v1134, %v1196
        %v1201 = vsel %vm1193, %v1135, %v1197
        %v1202 = vsel %vm1194, %v1136, %v1198
        %v1203 = vsel %vm1195, %v1137, %v1199
        %v1204 = vsel %vm1191, 1, 0
        %vm1205 = vcmp.eq.s32.totalorder %v1204, 1
        %v1206 = vsel %vm1205, %v1102, %v1200
        %v1207 = vsel %vm1205, %v1103, %v1201
        %v1208 = vsel %vm1205, %v1104, %v1202
        %v1209 = vsel %vm1205, %v1105, %v1203
        %v1210 = vsel %vm1190, 1, 0
        %vm1211 = vcmp.eq.s32.totalorder %v1210, 1
        %v1212 = vsel %vm1211, %v1098, %v1206
        %v1213 = vsel %vm1211, %v1099, %v1207
        %v1214 = vsel %vm1211, %v1100, %v1208
        %v1215 = vsel %vm1211, %v1101, %v1209
        %s1216 = scalar_lea.vmem %s289, 16 [#allocation8]
        %1217 = vst [vmem:[%s1216] sm:$0x3] %v903
        %1218 = vst [vmem:[%s1216 + $0x2] sm:$0x3] %v904
        %1219 = vst [vmem:[%s1216 + $0x4] sm:$0x3] %v905
        %1220 = vst [vmem:[%s1216 + $0x6] sm:$0x3] %v906
        %s1221 = scalar_lea.vmem %s296, 16 [#allocation10]
        %1222 = vst [vmem:[%s1221] sm:$0x3] %v999
        %1223 = vst [vmem:[%s1221 + $0x2] sm:$0x3] %v1001
        %1224 = vst [vmem:[%s1221 + $0x4] sm:$0x3] %v1003
        %1225 = vst [vmem:[%s1221 + $0x6] sm:$0x3] %v1005
        %v1226 = vadd.f32 %v898, %v1212
        %v1227 = vadd.f32 %v899, %v1213
        %v1228 = vadd.f32 %v900, %v1214
        %v1229 = vadd.f32 %v901, %v1215
        %v1230 = vld [vmem:[%s258] sm:$0x3]
        %v1231 = vld [vmem:[%s258 + $0x2] sm:$0x3]
        %v1232 = vld [vmem:[%s258 + $0x4] sm:$0x3]
        %v1233 = vld [vmem:[%s258 + $0x6] sm:$0x3]
        %v1234 = vadd.f32 %v1226, %v1230
        %v1235 = vadd.f32 %v1227, %v1231
        %v1236 = vadd.f32 %v1228, %v1232
        %v1237 = vadd.f32 %v1229, %v1233
        %vm1238 = vcmask 1041408
        %v1239 = vsel %vm1238, %v1230, -inf
        %v1240 = vsel %vm1238, %v1231, -inf
        %v1241 = vsel %vm1238, %v1232, -inf
        %v1242 = vsel %vm1238, %v1233, -inf
        %v1243 = vmax.f32 %v1239, %v1240
        %v1244 = vmax.f32 %v1241, %v1242
        %v1245 = vmax.f32 %v1243, %v1244
        %v1246 = vsub.f32 %v1230, %v1245
        %v1247 = vsub.f32 %v1231, %v1245
        %v1248 = vsub.f32 %v1232, %v1245
        %v1249 = vsub.f32 %v1233, %v1245
        %v1250 = vmul.f32 %v1246, 1.442695
        %v1251 = vpow.pop %v1250
        %v1252 = vmul.f32 %v1247, 1.442695
        %v1253 = vpow.pop %v1252
        %v1254 = vmul.f32 %v1248, 1.442695
        %v1255 = vpow.pop %v1254
        %v1256 = vmul.f32 %v1249, 1.442695
        %v1257 = vpow.pop %v1256
        %v1258 = vsel %vm1238, %v1251, 0.0
        %v1259 = vsel %vm1238, %v1253, 0.0
        %v1260 = vadd.f32 %v1258, %v1259
        %v1261 = vsel %vm1238, %v1255, 0.0
        %v1262 = vadd.f32 %v1260, %v1261
        %v1263 = vsel %vm1238, %v1257, 0.0
        %v1264 = vadd.f32 %v1262, %v1263
        %v1265 = vlog2.pop %v1264
        %v1266 = vmul.f32 %v1265, 0.6931472
        %v1267 = vadd.f32 %v1245, %v1266
        %v1268 = vsel %vm1238, %v1234, -inf
        %v1269 = vsel %vm1238, %v1235, -inf
        %v1270 = vsel %vm1238, %v1236, -inf
        %v1271 = vsel %vm1238, %v1237, -inf
        %v1272 = vmax.f32 %v1268, %v1269
        %v1273 = vmax.f32 %v1270, %v1271
        %v1274 = vmax.f32 %v1272, %v1273
        %v1275 = vsub.f32 %v1234, %v1274
        %v1276 = vsub.f32 %v1235, %v1274
        %v1277 = vsub.f32 %v1236, %v1274
        %v1278 = vsub.f32 %v1237, %v1274
        %v1279 = vmul.f32 %v1275, 1.442695
        %v1280 = vpow.pop %v1279
        %v1281 = vmul.f32 %v1276, 1.442695
        %v1282 = vpow.pop %v1281
        %v1283 = vmul.f32 %v1277, 1.442695
        %v1284 = vpow.pop %v1283
        %v1285 = vmul.f32 %v1278, 1.442695
        %v1286 = vpow.pop %v1285
        %v1287 = vsel %vm1238, %v1280, 0.0
        %v1288 = vsel %vm1238, %v1282, 0.0
        %v1289 = vadd.f32 %v1287, %v1288
        %v1290 = vsel %vm1238, %v1284, 0.0
        %v1291 = vadd.f32 %v1289, %v1290
        %v1292 = vsel %vm1238, %v1286, 0.0
        %v1293 = vadd.f32 %v1291, %v1292
        %v1294 = vlog2.pop %v1293
        %v1295 = vmul.f32 %v1294, 0.6931472
        %v1296 = vadd.f32 %v1274, %v1295
        %v1297 = vsub.f32 %v1267, %v1296
        %v1298 = vsel %vm1238, %v1297, 0.0
        %v1299 = vrot.slane %v1298, 4
        %v1300 = vadd.f32 %v1298, %v1299
        %v1301 = vrot.slane %v1300, 2
        %v1302 = vadd.f32 %v1300, %v1301
        %v1303 = vrot.slane %v1302, 1
        %v1304 = vadd.f32 %v1302, %v1303
        %1305 = vst [vmem:[%s282] sm:$0x1] %v1304
        %s1306 = sand.u32 %s106, 1
        %s1307 = scalar_lea.sflag [#allocation4], %s1306
        %s1308 = sand.u32 %s106, 1
        %s1309 = scalar_lea.vmem [#allocation7], %s1308
        %s1310 = sand.u32 %s28, 1
        %s1311 = scalar_lea.sflag [#allocation9], %s1310
        %s1312 = sand.u32 %s134, 1
        %s1313 = smul.addr %s1312, 24
        %s1314 = scalar_lea.vmem [#allocation8], %s1313
        %s1315 = sand.u32 %s28, 1
        %s1316 = scalar_lea.sflag [#allocation9], %s1315
        %s1317 = sand.u32 %s162, 1
        %s1318 = smul.addr %s1317, 24
        %s1319 = scalar_lea.vmem [#allocation10], %s1318
        // Predicated region
        $region37: #{tpu_custom_call.1} parent=27 // pred_check
          %p1320 = pneg %p116
        $region38: #{tpu_custom_call.1} parent=27 // pred_check_branch
          %1322 = sbr.rel (%p1320) target = $region40
        $region39: #{tpu_custom_call.1} parent=27 // pred_region
          %s1324 = ssub.s32 16, 16
          %1325 = vsyncadd %s1307, %s1324
          %s1326 = sadd.s32 %s33, %s32
          %s1327 = smul.addr %s1326, 16
          %s1328 = scalar_lea.hbm %s2, %s1327
          %s1330 = sshll.u32 %s1309, 4
          %s1331 = int_to_ptr.vmem [resolvable:$true] %s1330
          %1333 = dma.vmem_to_hbm [thread:$0]  %s1331, 16, %s1328, %s1307
        $region40: #{tpu_custom_call.1} parent=27 // pred_fallthru
          _
        // Predicated region
        $region41: #{tpu_custom_call.1} parent=27 // pred_check
          %p1334 = pneg %p144
        $region42: #{tpu_custom_call.1} parent=27 // pred_check_branch
          %1336 = sbr.rel (%p1334) target = $region44
        $region43: #{tpu_custom_call.1} parent=27 // pred_region
          %s1338 = ssub.s32 384, 384
          %1339 = vsyncadd %s1311, %s1338
          %s1340 = smul.addr %s32, 12
          %s1341 = sadd.s32 %s33, %s1340
          %s1342 = smul.addr %s1341, 32
          %s1343 = scalar_lea.hbm %s3, %s1342
          %s1344 = sshll.u32 %s1314, 4
          %s1345 = int_to_ptr.vmem [resolvable:$true] %s1344
          %1350 = dma.vmem_to_hbm [thread:$0]  %s1345, 384, %s1343, %s1311, 32, 32, 2
        $region44: #{tpu_custom_call.1} parent=27 // pred_fallthru
          _
        // Predicated region
        $region45: #{tpu_custom_call.1} parent=27 // pred_check
          %p1351 = pneg %p172
        $region46: #{tpu_custom_call.1} parent=27 // pred_check_branch
          %1353 = sbr.rel (%p1351) target = $region48
        $region47: #{tpu_custom_call.1} parent=27 // pred_region
          %s1355 = ssub.s32 384, 384
          %1356 = vsyncadd %s1316, %s1355
          %s1357 = smul.addr %s32, 12
          %s1358 = sadd.s32 %s33, %s1357
          %s1359 = smul.addr %s1358, 32
          %s1360 = scalar_lea.hbm %s4, %s1359
          %s1361 = sshll.u32 %s1319, 4
          %s1362 = int_to_ptr.vmem [resolvable:$true] %s1361
          %1367 = dma.vmem_to_hbm [thread:$0]  %s1362, 384, %s1360, %s1316, 32, 32, 2
        $region48: #{tpu_custom_call.1} parent=27 // pred_fallthru
          _
      $region28: #{tpu_custom_call.1} parent=5 // pred_fallthru
        _
      %p1368 = scmp.le.s32.totalorder 2, %s23
      // Predicated region
      $region49: #{tpu_custom_call.1} parent=5 // pred_check
        %p1369 = pneg %p1368
      $region50: #{tpu_custom_call.1} parent=5 // pred_check_branch
        %1371 = sbr.rel (%p1369) target = $region52
      $region51: #{tpu_custom_call.1} parent=5 // pred_region
        %s1372 = ssub.s32 %s23, 2
        // Predicated region
        $region53: #{tpu_custom_call.1} parent=51 // pred_check
          %p1373 = pneg %p122
        $region54: #{tpu_custom_call.1} parent=51 // pred_check_branch
          %1375 = sbr.rel (%p1373) target = $region56
        $region55: #{tpu_custom_call.1} parent=51 // pred_region
          %s1376 = sand.u32 %s107, 1
          %s1377 = scalar_lea.sflag [#allocation4], %s1376
          %s1378 = sand.u32 %s107, 1
          %s1379 = scalar_lea.vmem [#allocation7], %s1378
          %1380 = dma.done %s1377, 16
        $region56: #{tpu_custom_call.1} parent=51 // pred_fallthru
          _
        // Predicated region
        $region57: #{tpu_custom_call.1} parent=51 // pred_check
          %p1381 = pneg %p150
        $region58: #{tpu_custom_call.1} parent=51 // pred_check_branch
          %1383 = sbr.rel (%p1381) target = $region60
        $region59: #{tpu_custom_call.1} parent=51 // pred_region
          %s1384 = sand.u32 %s29, 1
          %s1385 = scalar_lea.sflag [#allocation9], %s1384
          %s1386 = sand.u32 %s135, 1
          %s1387 = smul.addr %s1386, 24
          %s1388 = scalar_lea.vmem [#allocation8], %s1387
          %1389 = dma.done %s1385, 384
        $region60: #{tpu_custom_call.1} parent=51 // pred_fallthru
          _
        // Predicated region
        $region61: #{tpu_custom_call.1} parent=51 // pred_check
          %p1390 = pneg %p178
        $region62: #{tpu_custom_call.1} parent=51 // pred_check_branch
          %1392 = sbr.rel (%p1390) target = $region64
        $region63: #{tpu_custom_call.1} parent=51 // pred_region
          %s1393 = sand.u32 %s29, 1
          %s1394 = scalar_lea.sflag [#allocation9], %s1393
          %s1395 = sand.u32 %s163, 1
          %s1396 = smul.addr %s1395, 24
          %s1397 = scalar_lea.vmem [#allocation10], %s1396
          %1398 = dma.done %s1394, 384
        $region64: #{tpu_custom_call.1} parent=51 // pred_fallthru
          _
      $region52: #{tpu_custom_call.1} parent=5 // pred_fallthru
        _
    $region6: #{tpu_custom_call.1} parent=1 // loop_footer
      %s27 = sadd.s32 1, %s23
    $region7: #{tpu_custom_call.1} parent=1 // loop_footer_branch
      %22 = sbr.rel target = $region3
    $region8: #{tpu_custom_call.1} parent=1 // loop_exit
      _
    %1399 = vsyncpa [#allocation3], 1
    %s1400 = scalar_lea.sflag [#allocation3], 1
    %1401 = vsyncpa %s1400, 1
    %1402 = vsyncpa [#allocation6], 1
    %s1403 = scalar_lea.sflag [#allocation6], 1
    %1404 = vsyncpa %s1403, 1
    %1405 = vsyncpa [#allocation4], 1
    %s1406 = scalar_lea.sflag [#allocation4], 1
    %1407 = vsyncpa %s1406, 1
    %1408 = vsyncpa [#allocation9], 1
    %s1409 = scalar_lea.sflag [#allocation9], 1
    %1410 = vsyncpa %s1409, 1

</llo_original>
